<compile_context>
chip_gen: v7x
topology: tpu7x:2x2x1
jax: 0.10.0
libtpu: 0.0.40
codegen_flags: <defaults>
</compile_context>

<pallas_src>
import functools

import numpy as np
import jax
import jax.numpy as jnp
from jax.experimental import pallas as pl
from jax.experimental.pallas import tpu as pltpu

# ---------------- config (matches cfg.melspec / cfg.audio, small synthetic sizes) -----
SAMPLE_RATE = 16000
N_FFT = 128
HOP_LENGTH = 32
WIN_LENGTH = 128
N_MELS = 16
F_MIN = 0.0
F_MAX = SAMPLE_RATE / 2.0
POWER = 2.0          # power spectrogram -> AmplitudeToDB multiplier = 10
TOP_DB = 80.0
NORM_EPS = 1e-6      # MinMaxNorm eps
AMIN = 1e-10         # torchaudio amplitude_to_DB amin
N_FREQ = N_FFT // 2 + 1
N_FREQ_PAD = 128                          # zero-padded freq bins -> lane-aligned
CHUNKS_PER_FRAME = N_FFT // HOP_LENGTH    # = 4 (hop must divide n_fft)
FRAME_TILE = 128                          # frame-axis padding -> lane-dense output


def _round_up(n, m):
    return (n + m - 1) // m * m


# ---------------- parameter construction (deterministic, glue) ------------------------
def _hann_periodic(win_length):
    n = np.arange(win_length, dtype=np.float64)
    return 0.5 - 0.5 * np.cos(2.0 * np.pi * n / win_length)


def _fused_dft_basis():
    """(n_fft, 2*N_FREQ_PAD) = [cos | sin] windowed DFT basis, zero-padded per half."""
    win = _hann_periodic(WIN_LENGTH)
    pad_l = (N_FFT - WIN_LENGTH) // 2
    window = np.zeros(N_FFT, dtype=np.float64)
    window[pad_l:pad_l + WIN_LENGTH] = win
    n = np.arange(N_FFT, dtype=np.float64)
    k = np.arange(N_FREQ, dtype=np.float64)
    ang = 2.0 * np.pi * np.outer(n, k) / N_FFT
    cos_b = np.cos(ang) * window[:, None]
    sin_b = np.sin(ang) * window[:, None]
    basis = np.zeros((N_FFT, 2 * N_FREQ_PAD), dtype=np.float64)
    basis[:, :N_FREQ] = cos_b                                  # lanes [0, 65)
    basis[:, N_FREQ_PAD:N_FREQ_PAD + N_FREQ] = sin_b           # lanes [128, 193)
    return basis.astype(np.float32)


def _mel_filterbank_padded():
    """torchaudio melscale_fbanks (htk, norm=None), zero-padded to (N_FREQ_PAD, n_mels)."""
    def hz_to_mel(f):
        return 2595.0 * np.log10(1.0 + f / 700.0)

    def mel_to_hz(m):
        return 700.0 * (10.0 ** (m / 2595.0) - 1.0)

    all_freqs = np.linspace(0.0, SAMPLE_RATE / 2.0, N_FREQ)
    m_pts = np.linspace(hz_to_mel(F_MIN), hz_to_mel(F_MAX), N_MELS + 2)
    f_pts = mel_to_hz(m_pts)
    f_diff = f_pts[1:] - f_pts[:-1]                       # (n_mels+1,)
    slopes = f_pts[None, :] - all_freqs[:, None]          # (n_freq, n_mels+2)
    down = -slopes[:, :-2] / f_diff[:-1]
    up = slopes[:, 2:] / f_diff[1:]
    fb = np.maximum(0.0, np.minimum(down, up))            # (n_freq, n_mels)
    fb_pad = np.zeros((N_FREQ_PAD, N_MELS), dtype=np.float32)
    fb_pad[:N_FREQ] = fb
    return fb_pad


# ---------------- Pallas kernel --------------------------------------------------------
def feature_kernel(audio_ref, basis_ref, fb_ref, out_ref, *, num_frames, t_pad):
    # audio_ref: (1, n_chunks_pad, hop)  f32  hop-sized chunks of padded audio (1 batch item)
    # basis_ref: (n_fft, 2*N_FREQ_PAD)   f32  fused windowed [cos | sin] DFT basis
    # fb_ref:    (N_FREQ_PAD, n_mels)    f32  mel filterbank (padded rows are zero)
    # out_ref:   (1, n_mels, t_pad)      f32  t_pad is a multiple of 128 (lane-dense store)

    # DFT projection with frame extraction folded into the matmul: frame t is the
    # concatenation of hop-chunks t..t+3, so
    #     proj[t] = sum_k chunks[t+k] @ basis[k*hop:(k+1)*hop]
    # -> 4 matmuls with M = t_pad >= 128, no frames scratch, no masked stores.
    proj = jnp.dot(audio_ref[0, 0:t_pad, :], basis_ref[0:HOP_LENGTH, :],
                   preferred_element_type=jnp.float32)          # (t_pad, 2*N_FREQ_PAD)
    for k in range(1, CHUNKS_PER_FRAME):
        proj = proj + jnp.dot(
            audio_ref[0, k:k + t_pad, :],
            basis_ref[k * HOP_LENGTH:(k + 1) * HOP_LENGTH, :],
            preferred_element_type=jnp.float32)

    re = proj[:, :N_FREQ_PAD]                                   # (t_pad, 128) cos part
    im = proj[:, N_FREQ_PAD:]                                   # (t_pad, 128) sin part
    power = re * re + im * im                                   # power=2.0; padded bins == 0

    # Mel projection in f32 (tiny matmul; padded freq rows of fb are zero).
    mel = jnp.dot(power, fb_ref[...],
                  preferred_element_type=jnp.float32)           # (t_pad, n_mels)

    # AmplitudeToDB (power -> dB), ref=1.0 so the db_multiplier term is 0.
    db = 10.0 * jnp.log10(jnp.maximum(mel, AMIN))

    # Reductions must ignore the padded frames t >= num_frames.
    valid = jax.lax.broadcasted_iota(jnp.int32, db.shape, 0) < num_frames
    db_max = jnp.max(jnp.where(valid, db, -jnp.inf))            # reused below
    db = jnp.maximum(db, db_max - TOP_DB)                       # top_db clamp
    db_min = jnp.min(jnp.where(valid, db, jnp.inf))             # post-clamp min

    # MinMaxNorm -- reproduces the original module exactly (names swapped in source):
    #   min_ = amax(X, (1,2)); max_ = amin(X, (1,2)); (X - min_) / (max_ - min_ + eps)
    out = (db - db_max) / (db_min - db_max + NORM_EPS)          # (t_pad, n_mels)

    # Emit (n_mels, t_pad): tiny XLU transpose; store is lane-dense (t_pad % 128 == 0).
    out_ref[0] = out.T


# ---------------- wrapper ---------------------------------------------------------------
def feature_extractor(x):
    """x: (B, L) float32 audio -> (B, n_mels, T) normalized log-mel spectrogram."""
    x = x.astype(jnp.float32)
    B, L = x.shape
    assert N_FFT % HOP_LENGTH == 0 and L % HOP_LENGTH == 0

    # center=True, reflect padding (torchaudio Spectrogram default).
    pad = N_FFT // 2
    xp = jnp.pad(x, ((0, 0), (pad, pad)), mode="reflect")       # (B, L + n_fft)

    num_frames = 1 + L // HOP_LENGTH
    t_pad = _round_up(num_frames, FRAME_TILE)                   # lane-dense frame axis
    # Frames 0..t_pad-1 need chunks 0..t_pad+2; zero-pad the tail (padded frames are
    # masked out of the reductions and cropped from the output).
    n_chunks_pad = _round_up(t_pad + CHUNKS_PER_FRAME - 1, 8)
    total = n_chunks_pad * HOP_LENGTH
    xp = jnp.pad(xp, ((0, 0), (0, total - (L + N_FFT))))
    audio_chunks = xp.reshape(B, n_chunks_pad, HOP_LENGTH)      # free reshape, no duplication

    basis = jnp.asarray(_fused_dft_basis())                     # (n_fft, 256) f32
    fb = jnp.asarray(_mel_filterbank_padded())                  # (128, n_mels) f32

    kernel = functools.partial(feature_kernel, num_frames=num_frames, t_pad=t_pad)

    out = pl.pallas_call(
        kernel,
        out_shape=jax.ShapeDtypeStruct((B, N_MELS, t_pad), jnp.float32),
        grid=(B,),
        in_specs=[
            pl.BlockSpec((1, n_chunks_pad, HOP_LENGTH), lambda b: (b, 0, 0)),
            # basis / fb are grid-invariant (constant index_map) -> DMA elided after step 0.
            pl.BlockSpec((N_FFT, 2 * N_FREQ_PAD), lambda b: (0, 0)),
            pl.BlockSpec((N_FREQ_PAD, N_MELS), lambda b: (0, 0)),
        ],
        out_specs=pl.BlockSpec((1, N_MELS, t_pad), lambda b: (b, 0, 0)),
        compiler_params=pltpu.CompilerParams(
            dimension_semantics=("parallel",)),                 # B>=2 -> both v7x TCs busy
    )(audio_chunks, basis, fb)

    return out[:, :, :num_frames]                               # crop padded frames


if __name__ == "__main__":
    key = jax.random.PRNGKey(0)
    B, L = 2, 512
    x = jax.random.normal(key, (B, L), dtype=jnp.float32)
    y = feature_extractor(x)
    jax.block_until_ready(y)
    assert y.shape == (B, N_MELS, 1 + L // HOP_LENGTH), y.shape
    assert bool(jnp.all(jnp.isfinite(y)))
    print("KERNEL_OK")
</pallas_src>

<mosaic_0001>
module attributes {stable_mosaic.version = 11 : i64} {
  func.func @feature_kernel(%arg0: i32, %arg1: memref<1x136x32xf32, #tpu.memory_space<vmem>>, %arg2: memref<128x256xf32, #tpu.memory_space<vmem>>, %arg3: memref<128x16xf32, #tpu.memory_space<vmem>>, %arg4: memref<1x16x128xf32, #tpu.memory_space<vmem>>) attributes {dimension_semantics = [#tpu.dimension_semantics<parallel>], iteration_bounds = array<i64: 2>, scalar_prefetch = 0 : i64, scratch_operands = 0 : i64, tpu.core_type = #tpu.core_type<tc>, window_params = [{transform_indices = @transform_0, window_bounds = array<i64: 1, 136, 32>}, {pipeline_mode = #tpu.pipeline_mode<synchronous>, transform_indices = @transform_1, window_bounds = array<i64: 128, 256>}, {pipeline_mode = #tpu.pipeline_mode<synchronous>, transform_indices = @transform_2, window_bounds = array<i64: 128, 16>}, {transform_indices = @transform_3, window_bounds = array<i64: 1, 16, 128>}]} {
    %c0 = arith.constant 0 : index
    %c0_0 = arith.constant 0 : index
    %c0_1 = arith.constant 0 : index
    %0 = vector.load %arg1[%c0, %c0_0, %c0_1] : memref<1x136x32xf32, #tpu.memory_space<vmem>>, vector<1x128x32xf32>
    %1 = vector.shape_cast %0 : vector<1x128x32xf32> to vector<128x32xf32>
    %c0_2 = arith.constant 0 : index
    %c0_3 = arith.constant 0 : index
    %2 = vector.load %arg2[%c0_2, %c0_3] : memref<128x256xf32, #tpu.memory_space<vmem>>, vector<32x256xf32>
    %cst = arith.constant dense<0.000000e+00> : vector<128x256xf32>
    %3 = tpu.matmul %1, %2, %cst {dimension_numbers = #tpu.dot_dimension_numbers<[1], [0], [0], [1], [0, 0, 1, 1], [], []>} : vector<128x32xf32>, vector<32x256xf32>, vector<128x256xf32> -> vector<128x256xf32>
    %c0_4 = arith.constant 0 : index
    %c1 = arith.constant 1 : index
    %c0_5 = arith.constant 0 : index
    %4 = vector.load %arg1[%c0_4, %c1, %c0_5] : memref<1x136x32xf32, #tpu.memory_space<vmem>>, vector<1x128x32xf32>
    %5 = vector.shape_cast %4 : vector<1x128x32xf32> to vector<128x32xf32>
    %c32 = arith.constant 32 : index
    %c0_6 = arith.constant 0 : index
    %6 = vector.load %arg2[%c32, %c0_6] : memref<128x256xf32, #tpu.memory_space<vmem>>, vector<32x256xf32>
    %cst_7 = arith.constant dense<0.000000e+00> : vector<128x256xf32>
    %7 = tpu.matmul %5, %6, %cst_7 {dimension_numbers = #tpu.dot_dimension_numbers<[1], [0], [0], [1], [0, 0, 1, 1], [], []>} : vector<128x32xf32>, vector<32x256xf32>, vector<128x256xf32> -> vector<128x256xf32>
    %8 = arith.addf %3, %7 : vector<128x256xf32>
    %c0_8 = arith.constant 0 : index
    %c2 = arith.constant 2 : index
    %c0_9 = arith.constant 0 : index
    %9 = vector.load %arg1[%c0_8, %c2, %c0_9] : memref<1x136x32xf32, #tpu.memory_space<vmem>>, vector<1x128x32xf32>
    %10 = vector.shape_cast %9 : vector<1x128x32xf32> to vector<128x32xf32>
    %c64 = arith.constant 64 : index
    %c0_10 = arith.constant 0 : index
    %11 = vector.load %arg2[%c64, %c0_10] : memref<128x256xf32, #tpu.memory_space<vmem>>, vector<32x256xf32>
    %cst_11 = arith.constant dense<0.000000e+00> : vector<128x256xf32>
    %12 = tpu.matmul %10, %11, %cst_11 {dimension_numbers = #tpu.dot_dimension_numbers<[1], [0], [0], [1], [0, 0, 1, 1], [], []>} : vector<128x32xf32>, vector<32x256xf32>, vector<128x256xf32> -> vector<128x256xf32>
    %13 = arith.addf %8, %12 : vector<128x256xf32>
    %c0_12 = arith.constant 0 : index
    %c3 = arith.constant 3 : index
    %c0_13 = arith.constant 0 : index
    %14 = vector.load %arg1[%c0_12, %c3, %c0_13] : memref<1x136x32xf32, #tpu.memory_space<vmem>>, vector<1x128x32xf32>
    %15 = vector.shape_cast %14 : vector<1x128x32xf32> to vector<128x32xf32>
    %c96 = arith.constant 96 : index
    %c0_14 = arith.constant 0 : index
    %16 = vector.load %arg2[%c96, %c0_14] : memref<128x256xf32, #tpu.memory_space<vmem>>, vector<32x256xf32>
    %cst_15 = arith.constant dense<0.000000e+00> : vector<128x256xf32>
    %17 = tpu.matmul %15, %16, %cst_15 {dimension_numbers = #tpu.dot_dimension_numbers<[1], [0], [0], [1], [0, 0, 1, 1], [], []>} : vector<128x32xf32>, vector<32x256xf32>, vector<128x256xf32> -> vector<128x256xf32>
    %18 = arith.addf %13, %17 : vector<128x256xf32>
    %19 = vector.extract_strided_slice %18 {offsets = [0, 0], sizes = [128, 128], strides = [1, 1]} : vector<128x256xf32> to vector<128x128xf32>
    %20 = vector.extract_strided_slice %18 {offsets = [0, 128], sizes = [128, 128], strides = [1, 1]} : vector<128x256xf32> to vector<128x128xf32>
    %21 = arith.mulf %19, %19 : vector<128x128xf32>
    %22 = arith.mulf %20, %20 : vector<128x128xf32>
    %23 = arith.addf %21, %22 : vector<128x128xf32>
    %c0_16 = arith.constant 0 : index
    %c0_17 = arith.constant 0 : index
    %24 = vector.load %arg3[%c0_16, %c0_17] : memref<128x16xf32, #tpu.memory_space<vmem>>, vector<128x16xf32>
    %cst_18 = arith.constant dense<0.000000e+00> : vector<128x16xf32>
    %25 = tpu.matmul %23, %24, %cst_18 {dimension_numbers = #tpu.dot_dimension_numbers<[1], [0], [0], [1], [0, 0, 1, 1], [], []>} : vector<128x128xf32>, vector<128x16xf32>, vector<128x16xf32> -> vector<128x16xf32>
    %cst_19 = arith.constant 1.000000e-10 : f32
    %26 = vector.broadcast %cst_19 : f32 to vector<128x16xf32>
    %27 = arith.maximumf %25, %26 : vector<128x16xf32>
    %28 = math.log %27 : vector<128x16xf32>
    %cst_20 = arith.constant 0.434294492 : f32
    %29 = vector.broadcast %cst_20 : f32 to vector<128x16xf32>
    %30 = arith.mulf %28, %29 : vector<128x16xf32>
    %cst_21 = arith.constant 1.000000e+01 : f32
    %31 = vector.broadcast %cst_21 : f32 to vector<128x16xf32>
    %32 = arith.mulf %31, %30 : vector<128x16xf32>
    %33 = tpu.iota {dimensions = array<i32: 0>} : vector<128x16xi32>
    %c17_i32 = arith.constant 17 : i32
    %34 = vector.broadcast %c17_i32 : i32 to vector<128x16xi32>
    %35 = arith.cmpi slt, %33, %34 : vector<128x16xi32>
    %cst_22 = arith.constant 0xFF800000 : f32
    %36 = vector.broadcast %cst_22 : f32 to vector<128x16xf32>
    %37 = arith.select %35, %32, %36 : vector<128x16xi1>, vector<128x16xf32>
    %38 = vector.shape_cast %37 : vector<128x16xf32> to vector<1x128x16xf32>
    %cst_23 = arith.constant dense<0xFF800000> : vector<1xf32>
    %39 = vector.multi_reduction <maximumf>, %38, %cst_23 [1, 2] : vector<1x128x16xf32> to vector<1xf32>
    %40 = vector.shape_cast %39 : vector<1xf32> to vector<1x1x1xf32>
    %41 = vector.extract %40[0, 0, 0] : f32 from vector<1x1x1xf32>
    %cst_24 = arith.constant 8.000000e+01 : f32
    %42 = arith.subf %41, %cst_24 : f32
    %43 = vector.broadcast %42 : f32 to vector<128x16xf32>
    %44 = arith.maximumf %32, %43 : vector<128x16xf32>
    %cst_25 = arith.constant 0x7F800000 : f32
    %45 = vector.broadcast %cst_25 : f32 to vector<128x16xf32>
    %46 = arith.select %35, %44, %45 : vector<128x16xi1>, vector<128x16xf32>
    %47 = vector.shape_cast %46 : vector<128x16xf32> to vector<1x128x16xf32>
    %cst_26 = arith.constant dense<0x7F800000> : vector<1xf32>
    %48 = vector.multi_reduction <minimumf>, %47, %cst_26 [1, 2] : vector<1x128x16xf32> to vector<1xf32>
    %49 = vector.shape_cast %48 : vector<1xf32> to vector<1x1x1xf32>
    %50 = vector.extract %49[0, 0, 0] : f32 from vector<1x1x1xf32>
    %51 = vector.broadcast %41 : f32 to vector<128x16xf32>
    %52 = arith.subf %44, %51 : vector<128x16xf32>
    %53 = arith.subf %50, %41 : f32
    %cst_27 = arith.constant 9.99999997E-7 : f32
    %54 = arith.addf %53, %cst_27 : f32
    %55 = vector.broadcast %54 : f32 to vector<128x16xf32>
    %56 = arith.divf %52, %55 : vector<128x16xf32>
    %57 = tpu.transpose %56, [1, 0] : vector<128x16xf32> -> vector<16x128xf32>
    %c0_28 = arith.constant 0 : index
    %c0_29 = arith.constant 0 : index
    %c0_30 = arith.constant 0 : index
    %58 = vector.load %arg4[%c0_28, %c0_29, %c0_30] : memref<1x16x128xf32, #tpu.memory_space<vmem>>, vector<1x16x128xf32>
    %59 = vector.shape_cast %58 : vector<1x16x128xf32> to vector<16x128xf32>
    %60 = vector.shape_cast %57 : vector<16x128xf32> to vector<1x16x128xf32>
    tpu.vector_store %arg4[%c0_28, %c0_29, %c0_30], %60 {strides = array<i32>} : memref<1x16x128xf32, #tpu.memory_space<vmem>>, vector<1x16x128xf32>,
    return
  }
  func.func @transform_0(%arg0: i32) -> (i32, i32, i32) {
    %c0_i32 = arith.constant 0 : i32
    %c0_i32_0 = arith.constant 0 : i32
    %c0_i32_1 = arith.constant 0 : i32
    return %arg0, %c0_i32, %c0_i32_0 : i32, i32, i32
  }
  func.func @transform_1(%arg0: i32) -> (i32, i32) {
    %c0_i32 = arith.constant 0 : i32
    %c0_i32_0 = arith.constant 0 : i32
    %c0_i32_1 = arith.constant 0 : i32
    return %c0_i32, %c0_i32_0 : i32, i32
  }
  func.func @transform_2(%arg0: i32) -> (i32, i32) {
    %c0_i32 = arith.constant 0 : i32
    %c0_i32_0 = arith.constant 0 : i32
    %c0_i32_1 = arith.constant 0 : i32
    return %c0_i32, %c0_i32_0 : i32, i32
  }
  func.func @transform_3(%arg0: i32) -> (i32, i32, i32) {
    %c0_i32 = arith.constant 0 : i32
    %c0_i32_0 = arith.constant 0 : i32
    %c0_i32_1 = arith.constant 0 : i32
    return %arg0, %c0_i32, %c0_i32_0 : i32, i32, i32
  }
}

</mosaic_0001>

<llo_original>
// kernel: tpu_custom_call.1
$region0: #{tpu_custom_call.1}
  #allocation0 [shape = 'u32[]', space=smem, size = 0x4, offset = 0x4, fixed_abs, tag = 'smem constant byte address 0x4 - core index']
  #allocation1 [shape = 'u32[144,128]{1,0:T(1,128)}', space=vmem, size = 0x12000, scoped, tag = 'internal scratch']
  %s0 = inlined_call_operand.vmem [shape: f32[2,136,32], index: 0, kind: input, shape index: {}]
  %s1 = inlined_call_operand.vmem [shape: f32[128,256], index: 1, kind: input, shape index: {}]
  %s2 = inlined_call_operand.vmem [shape: f32[128,16], index: 2, kind: input, shape index: {}]
  %s3 = inlined_call_operand.hbm [shape: f32[2,16,128], index: 3, kind: output, shape index: {}]
  %s4 = sld [smem:[#allocation0]]
  $region45: #{tpu_custom_call.1} parent=0
    _
  %s6 = ssub.s32 1, %s4
  %s7 = scalar_select 0, %s6, %s4
  $region1: #{tpu_custom_call.1} parent=0
    #allocation2 [shape = 'u8[16384]{0}', space=vmem, size = 0x4000, scoped, tag = 'output window, operand 0']
    #allocation3 [shape = 's32[2]{0}', space=sflag, size = 0x8, scoped, tag = 'scoped memory for tpu_custom_call.1']
    %8 = vsyncpa [#allocation3], 0
    %s9 = scalar_lea.sflag [#allocation3], 1
    %10 = vsyncpa %s9, 0
    loop: start=0, step=1, limit=4
    $region2: #{tpu_custom_call.1} parent=1 // loop_pre_header
      _
    $region3: #{tpu_custom_call.1} parent=1 // loop_header
      %s12 = sphi 0, %s16
      %p13 = scmp.ge.s32.totalorder %s12, 4
      %s22 = sphi 0, %s24
      %s25 = sphi 0, %s22
      %s26 = sphi 0, %s25
      %s42 = sphi 0, %s26
      %s46 = sphi 0, %s46
      %s48 = sphi 0, %s46
      %s49 = sphi 0, %s48
      %s63 = sphi 0, %s49
      %s67 = sphi 0, %s67
      %s69 = sphi 0, %s67
      %s70 = sphi 0, %s69
      %s84 = sphi 0, %s70
      %s90 = sphi 0, %s92
      %s93 = sphi 0, %s90
      %s94 = sphi 0, %s93
      %s110 = sphi 0, %s94
    $region4: #{tpu_custom_call.1} parent=1 // loop_header_branch
      %15 = sbr.rel (%p13) target = $region8
    $region5: #{tpu_custom_call.1} parent=1 // loop_body
      %s17 = ssub.s32 %s12, 1
      %s18 = ssub.s32 %s12, 2
      %s19 = sadd.s32 %s12, 1
      %s20 = ssub.s32 %s12, %s19
      %p21 = scmp.eq.s32.totalorder %s20, 0
      %s23 = sadd.s32 %s22, 1
      %s24 = scalar_select %p21, %s22, %s23
      %p27 = pneg %p21
      %p28 = scmp.eq.s32.totalorder %s12, 1
      %p29 = por %p27, %p28
      %p30 = scmp.ne.s32.totalorder %s22, %s25
      %p31 = scmp.eq.s32.totalorder %s12, 0
      %p32 = por %p30, %p31
      %p33 = scmp.ne.s32.totalorder %s22, %s25
      %p34 = scmp.eq.s32.totalorder %s17, 1
      %p35 = por %p33, %p34
      %p36 = scmp.ne.s32.totalorder %s25, %s26
      %p37 = scmp.eq.s32.totalorder %s17, 0
      %p38 = por %p36, %p37
      %p39 = scmp.ne.s32.totalorder %s25, %s26
      %p40 = scmp.eq.s32.totalorder %s18, 1
      %p41 = por %p39, %p40
      %p43 = scmp.ne.s32.totalorder %s26, %s42
      %p44 = scmp.eq.s32.totalorder %s18, 0
      %p45 = por %p43, %p44
      %s47 = sadd.s32 %s46, 1
      %p50 = scmp.eq.s32.totalorder %s12, 1
      %p51 = scmp.ne.s32.totalorder %s46, %s48
      %p52 = scmp.eq.s32.totalorder %s12, 0
      %p53 = por %p51, %p52
      %p54 = scmp.ne.s32.totalorder %s46, %s48
      %p55 = scmp.eq.s32.totalorder %s17, 1
      %p56 = por %p54, %p55
      %p57 = scmp.ne.s32.totalorder %s48, %s49
      %p58 = scmp.eq.s32.totalorder %s17, 0
      %p59 = por %p57, %p58
      %p60 = scmp.ne.s32.totalorder %s48, %s49
      %p61 = scmp.eq.s32.totalorder %s18, 1
      %p62 = por %p60, %p61
      %p64 = scmp.ne.s32.totalorder %s49, %s63
      %p65 = scmp.eq.s32.totalorder %s18, 0
      %p66 = por %p64, %p65
      %s68 = sadd.s32 %s67, 1
      %p71 = scmp.eq.s32.totalorder %s12, 1
      %p72 = scmp.ne.s32.totalorder %s67, %s69
      %p73 = scmp.eq.s32.totalorder %s12, 0
      %p74 = por %p72, %p73
      %p75 = scmp.ne.s32.totalorder %s67, %s69
      %p76 = scmp.eq.s32.totalorder %s17, 1
      %p77 = por %p75, %p76
      %p78 = scmp.ne.s32.totalorder %s69, %s70
      %p79 = scmp.eq.s32.totalorder %s17, 0
      %p80 = por %p78, %p79
      %p81 = scmp.ne.s32.totalorder %s69, %s70
      %p82 = scmp.eq.s32.totalorder %s18, 1
      %p83 = por %p81, %p82
      %p85 = scmp.ne.s32.totalorder %s70, %s84
      %p86 = scmp.eq.s32.totalorder %s18, 0
      %p87 = por %p85, %p86
      %s88 = ssub.s32 %s12, %s19
      %p89 = scmp.eq.s32.totalorder %s88, 0
      %s91 = sadd.s32 %s90, 1
      %s92 = scalar_select %p89, %s90, %s91
      %p95 = pneg %p89
      %p96 = scmp.eq.s32.totalorder %s12, 1
      %p97 = por %p95, %p96
      %p98 = scmp.ne.s32.totalorder %s90, %s93
      %p99 = scmp.eq.s32.totalorder %s12, 0
      %p100 = por %p98, %p99
      %p101 = scmp.ne.s32.totalorder %s90, %s93
      %p102 = scmp.eq.s32.totalorder %s17, 1
      %p103 = por %p101, %p102
      %p104 = scmp.ne.s32.totalorder %s93, %s94
      %p105 = scmp.eq.s32.totalorder %s17, 0
      %p106 = por %p104, %p105
      %p107 = scmp.ne.s32.totalorder %s93, %s94
      %p108 = scmp.eq.s32.totalorder %s18, 1
      %p109 = por %p107, %p108
      %p111 = scmp.ne.s32.totalorder %s94, %s110
      %p112 = scmp.eq.s32.totalorder %s18, 0
      %p113 = por %p111, %p112
      %p114 = scmp.le.s32.totalorder 1, %s12
      %p115 = scmp.lt.s32.totalorder %s12, 3
      %p116 = pnand %p114, %p115
      %p117 = pneg %p116
      // Predicated region
      $region9: #{tpu_custom_call.1} parent=5 // pred_check
        _
      $region10: #{tpu_custom_call.1} parent=5 // pred_check_branch
        %119 = sbr.rel (%p116) target = $region12
      $region11: #{tpu_custom_call.1} parent=5 // pred_region
        %s120 = ssub.s32 %s12, 1
        // Predicated region
        $region13: #{tpu_custom_call.1} parent=11 // pred_check
          %p121 = pneg %p59
        $region14: #{tpu_custom_call.1} parent=11 // pred_check_branch
          %123 = sbr.rel (%p121) target = $region16
        $region15: #{tpu_custom_call.1} parent=11 // pred_region
          _
        $region16: #{tpu_custom_call.1} parent=11 // pred_fallthru
          _
        // Predicated region
        $region17: #{tpu_custom_call.1} parent=11 // pred_check
          %p124 = pneg %p80
        $region18: #{tpu_custom_call.1} parent=11 // pred_check_branch
          %126 = sbr.rel (%p124) target = $region20
        $region19: #{tpu_custom_call.1} parent=11 // pred_region
          _
        $region20: #{tpu_custom_call.1} parent=11 // pred_fallthru
          _
      $region12: #{tpu_custom_call.1} parent=5 // pred_fallthru
        _
      %p127 = scmp.lt.s32.totalorder %s12, 2
      // Predicated region
      $region21: #{tpu_custom_call.1} parent=5 // pred_check
        %p128 = pneg %p127
      $region22: #{tpu_custom_call.1} parent=5 // pred_check_branch
        %130 = sbr.rel (%p128) target = $region24
      $region23: #{tpu_custom_call.1} parent=5 // pred_region
        // Predicated region
        $region25: #{tpu_custom_call.1} parent=23 // pred_check
          %p131 = pneg %p32
        $region26: #{tpu_custom_call.1} parent=23 // pred_check_branch
          %133 = sbr.rel (%p131) target = $region28
        $region27: #{tpu_custom_call.1} parent=23 // pred_region
          %p134 = scmp.lt.s32.totalorder %s12, 1
          %s135 = scalar_select %p134, %s12, 1
          %s136 = smul.addr %s135, 17
          %s137 = smul.addr %s136, 8
          %s138 = scalar_lea.vmem %s0, %s137
        $region28: #{tpu_custom_call.1} parent=23 // pred_fallthru
          _
      $region24: #{tpu_custom_call.1} parent=5 // pred_fallthru
        _
      %p139 = scmp.le.s32.totalorder 1, %s12
      %p140 = scmp.lt.s32.totalorder %s12, 3
      %p141 = pnand %p139, %p140
      %p142 = pneg %p141
      // Predicated region
      $region29: #{tpu_custom_call.1} parent=5 // pred_check
        _
      $region30: #{tpu_custom_call.1} parent=5 // pred_check_branch
        %144 = sbr.rel (%p141) target = $region32
      $region31: #{tpu_custom_call.1} parent=5 // pred_region
        %s145 = ssub.s32 %s12, 1
        %p146 = scmp.lt.s32.totalorder %s17, 1
        %s147 = scalar_select %p146, %s17, 1
        %s148 = smul.addr %s147, 17
        %s149 = smul.addr %s148, 8
        %s150 = scalar_lea.vmem %s0, %s149
        %p151 = pneg %p38
        %p152 = pneg %p35
        %p153 = pneg %p59
        %p154 = pneg %p56
        %p155 = pneg %p80
        %p156 = pneg %p77
        %p157 = pneg %p106
        %p158 = pneg %p103
        %s159 = sand.u32 %s93, 1
        %s160 = scalar_lea.sflag [#allocation3], %s159
        %s161 = sand.u32 %s93, 1
        %s162 = smul.addr %s161, 16
        %s163 = scalar_lea.vmem [#allocation2], %s162
        %p164 = scmp.lt.s32.totalorder %s17, 1
        %s165 = scalar_select %p164, %s17, 1
        %s166 = smul.addr %s165, 17
        %s167 = smul.addr %s166, 8
        %s168 = scalar_lea.vmem %s0, %s167
        %v169 = vld [vmem:[%s168] sm:$0xff]
        %v170 = vld [vmem:[%s168 + $0x8] sm:$0xff]
        %v171 = vld [vmem:[%s168 + $0x10] sm:$0xff]
        %v172 = vld [vmem:[%s168 + $0x18] sm:$0xff]
        %v173 = vld [vmem:[%s168 + $0x20] sm:$0xff]
        %v174 = vld [vmem:[%s168 + $0x28] sm:$0xff]
        %v175 = vld [vmem:[%s168 + $0x30] sm:$0xff]
        %v176 = vld [vmem:[%s168 + $0x38] sm:$0xff]
        %v177 = vld [vmem:[%s168 + $0x40] sm:$0xff]
        %v178 = vld [vmem:[%s168 + $0x48] sm:$0xff]
        %v179 = vld [vmem:[%s168 + $0x50] sm:$0xff]
        %v180 = vld [vmem:[%s168 + $0x58] sm:$0xff]
        %v181 = vld [vmem:[%s168 + $0x60] sm:$0xff]
        %v182 = vld [vmem:[%s168 + $0x68] sm:$0xff]
        %v183 = vld [vmem:[%s168 + $0x70] sm:$0xff]
        %v184 = vld [vmem:[%s168 + $0x78] sm:$0xff]
        %v185 = vld [vmem:[%s1] sm:$0xff]
        %v186 = vld [vmem:[%s1 + $0x8] sm:$0xff]
        %v187 = vld [vmem:[%s1 + $0x10] sm:$0xff]
        %v188 = vld [vmem:[%s1 + $0x18] sm:$0xff]
        %v189 = vld [vmem:[%s1 + $0x20] sm:$0xff]
        %v190 = vld [vmem:[%s1 + $0x28] sm:$0xff]
        %v191 = vld [vmem:[%s1 + $0x30] sm:$0xff]
        %v192 = vld [vmem:[%s1 + $0x38] sm:$0xff]
        %v193 = vld [vmem:[%s168 + $0x1] sm:$0xff]
        %v194 = vld [vmem:[%s168 + $0x9] sm:$0xff]
        %v195 = vld [vmem:[%s168 + $0x11] sm:$0xff]
        %v196 = vld [vmem:[%s168 + $0x19] sm:$0xff]
        %v197 = vld [vmem:[%s168 + $0x21] sm:$0xff]
        %v198 = vld [vmem:[%s168 + $0x29] sm:$0xff]
        %v199 = vld [vmem:[%s168 + $0x31] sm:$0xff]
        %v200 = vld [vmem:[%s168 + $0x39] sm:$0xff]
        %v201 = vld [vmem:[%s168 + $0x41] sm:$0xff]
        %v202 = vld [vmem:[%s168 + $0x49] sm:$0xff]
        %v203 = vld [vmem:[%s168 + $0x51] sm:$0xff]
        %v204 = vld [vmem:[%s168 + $0x59] sm:$0xff]
        %v205 = vld [vmem:[%s168 + $0x61] sm:$0xff]
        %v206 = vld [vmem:[%s168 + $0x69] sm:$0xff]
        %v207 = vld [vmem:[%s168 + $0x71] sm:$0xff]
        %v208 = vld [vmem:[%s168 + $0x79] sm:$0xff]
        %v209 = vld [vmem:[%s1 + $0x40] sm:$0xff]
        %v210 = vld [vmem:[%s1 + $0x48] sm:$0xff]
        %v211 = vld [vmem:[%s1 + $0x50] sm:$0xff]
        %v212 = vld [vmem:[%s1 + $0x58] sm:$0xff]
        %v213 = vld [vmem:[%s1 + $0x60] sm:$0xff]
        %v214 = vld [vmem:[%s1 + $0x68] sm:$0xff]
        %v215 = vld [vmem:[%s1 + $0x70] sm:$0xff]
        %v216 = vld [vmem:[%s1 + $0x78] sm:$0xff]
        %vm217 = vcmask 261120
        %v219 = vsel %vm217, %v193, 0
        %v222 = vsel %vm217, %v194, 0
        %v225 = vsel %vm217, %v195, 0
        %v228 = vsel %vm217, %v196, 0
        %v231 = vsel %vm217, %v197, 0
        %v234 = vsel %vm217, %v198, 0
        %v237 = vsel %vm217, %v199, 0
        %v240 = vsel %vm217, %v200, 0
        %v243 = vsel %vm217, %v201, 0
        %v246 = vsel %vm217, %v202, 0
        %v249 = vsel %vm217, %v203, 0
        %v252 = vsel %vm217, %v204, 0
        %v255 = vsel %vm217, %v205, 0
        %v258 = vsel %vm217, %v206, 0
        %v261 = vsel %vm217, %v207, 0
        %v264 = vsel %vm217, %v208, 0
        %266 = vmatprep.subr.mxu0 %v210
        %267 = vmatpush1.msra.mxu0 %v209
        %268 = vmatprep.subr.mxu0 %v212
        %269 = vmatpush1.msra.mxu0 %v211
        %270 = vmatprep.subr.mxu0 %v214
        %271 = vmatpush1.msra.mxu0 %v213
        %272 = vmatprep.subr.mxu0 %v216
        %273 = vmatpush1.msra.mxu0 %v215
        %274 = vmatprep.subr.mxu0 0.0
        %275 = vmatpush1.msra.mxu0 0.0
        %276 = vmatprep.subr.mxu0 0.0
        %277 = vmatpush1.msra.mxu0 0.0
        %278 = vmatprep.subr.mxu0 0.0
        %279 = vmatpush1.msra.mxu0 0.0
        %280 = vmatprep.subr.mxu0 0.0
        %281 = vmatpush1.msra.mxu0 0.0
        %282 = vmatprep.subr.mxu0 0.0
        %283 = vmatpush1.msra.mxu0 0.0
        %284 = vmatprep.subr.mxu0 0.0
        %285 = vmatpush1.msra.mxu0 0.0
        %286 = vmatprep.subr.mxu0 0.0
        %287 = vmatpush1.msra.mxu0 0.0
        %288 = vmatprep.subr.mxu0 0.0
        %289 = vmatpush1.msra.mxu0 0.0
        %290 = vmatprep.subr.mxu0 0.0
        %291 = vmatpush1.msra.mxu0 0.0
        %292 = vmatprep.subr.mxu0 0.0
        %293 = vmatpush1.msra.mxu0 0.0
        %294 = vmatprep.subr.mxu0 0.0
        %295 = vmatpush1.msra.mxu0 0.0
        %296 = vmatprep.subr.mxu0 0.0
        %297 = vmatpush1.msra.mxu0 0.0
        %298 = vmatprep.subr.mxu0 0.0
        %299 = vmatpush1.msra.mxu0 0.0
        %300 = vmatprep.subr.mxu0 0.0
        %301 = vmatpush1.msra.mxu0 0.0
        %302 = vmatprep.subr.mxu0 0.0
        %303 = vmatpush1.msra.mxu0 0.0
        %304 = vmatprep.subr.mxu0 0.0
        %305 = vmatpush1.msra.mxu0 0.0
        %306 = vmatprep.subr.mxu0 0.0
        %307 = vmatpush1.msra.mxu0 0.0
        %308 = vmatprep.subr.mxu0 0.0
        %309 = vmatpush1.msra.mxu0 0.0
        %310 = vmatprep.subr.mxu0 0.0
        %311 = vmatpush1.msra.mxu0 0.0
        %312 = vmatprep.subr.mxu0 0.0
        %313 = vmatpush1.msra.mxu0 0.0
        %314 = vmatprep.subr.mxu0 0.0
        %315 = vmatpush1.msra.mxu0 0.0
        %316 = vmatprep.subr.mxu0 0.0
        %317 = vmatpush1.msra.mxu0 0.0
        %318 = vmatprep.subr.mxu0 0.0
        %319 = vmatpush1.msra.mxu0 0.0
        %320 = vmatprep.subr.mxu0 0.0
        %321 = vmatpush1.msra.mxu0 0.0
        %322 = vmatprep.subr.mxu0 0.0
        %323 = vmatpush1.msra.mxu0 0.0
        %324 = vmatprep.subr.mxu0 0.0
        %325 = vmatpush1.msra.mxu0 0.0
        %326 = vmatprep.subr.mxu0 0.0
        %327 = vmatpush1.msra.mxu0 0.0
        %328 = vmatprep.subr.mxu0 0.0
        %329 = vmatpush1.msra.mxu0 0.0
        %330 = vmatprep.mubr.f32.mxu0 0.0
        %331 = vmatmul.mubr.f32.gmra.mrb[0].mxu0 %v219
        %v332 = vpop.f32.mrb[0].mxu0
        %v333 = vadd.f32 0.0, %v332
        %v334 = vpop.f32.mrb[0].mxu0
        %v335 = vadd.f32 0.0, %v334
        %336 = vmatprep.mubr.f32.mxu0 0.0
        %337 = vmatmul.mubr.f32.gmra.mrb[0].mxu0 %v222
        %v338 = vpop.f32.mrb[0].mxu0
        %v339 = vadd.f32 0.0, %v338
        %v340 = vpop.f32.mrb[0].mxu0
        %v341 = vadd.f32 0.0, %v340
        %342 = vmatprep.mubr.f32.mxu0 0.0
        %343 = vmatmul.mubr.f32.gmra.mrb[0].mxu0 %v225
        %v344 = vpop.f32.mrb[0].mxu0
        %v345 = vadd.f32 0.0, %v344
        %v346 = vpop.f32.mrb[0].mxu0
        %v347 = vadd.f32 0.0, %v346
        %348 = vmatprep.mubr.f32.mxu0 0.0
        %349 = vmatmul.mubr.f32.gmra.mrb[0].mxu0 %v228
        %v350 = vpop.f32.mrb[0].mxu0
        %v351 = vadd.f32 0.0, %v350
        %v352 = vpop.f32.mrb[0].mxu0
        %v353 = vadd.f32 0.0, %v352
        %354 = vmatprep.mubr.f32.mxu0 0.0
        %355 = vmatmul.mubr.f32.gmra.mrb[0].mxu0 %v231
        %v356 = vpop.f32.mrb[0].mxu0
        %v357 = vadd.f32 0.0, %v356
        %v358 = vpop.f32.mrb[0].mxu0
        %v359 = vadd.f32 0.0, %v358
        %360 = vmatprep.mubr.f32.mxu0 0.0
        %361 = vmatmul.mubr.f32.gmra.mrb[0].mxu0 %v234
        %v362 = vpop.f32.mrb[0].mxu0
        %v363 = vadd.f32 0.0, %v362
        %v364 = vpop.f32.mrb[0].mxu0
        %v365 = vadd.f32 0.0, %v364
        %366 = vmatprep.mubr.f32.mxu0 0.0
        %367 = vmatmul.mubr.f32.gmra.mrb[0].mxu0 %v237
        %v368 = vpop.f32.mrb[0].mxu0
        %v369 = vadd.f32 0.0, %v368
        %v370 = vpop.f32.mrb[0].mxu0
        %v371 = vadd.f32 0.0, %v370
        %372 = vmatprep.mubr.f32.mxu0 0.0
        %373 = vmatmul.mubr.f32.gmra.mrb[0].mxu0 %v240
        %v374 = vpop.f32.mrb[0].mxu0
        %v375 = vadd.f32 0.0, %v374
        %v376 = vpop.f32.mrb[0].mxu0
        %v377 = vadd.f32 0.0, %v376
        %378 = vmatprep.mubr.f32.mxu0 0.0
        %379 = vmatmul.mubr.f32.gmra.mrb[0].mxu0 %v243
        %v380 = vpop.f32.mrb[0].mxu0
        %v381 = vadd.f32 0.0, %v380
        %v382 = vpop.f32.mrb[0].mxu0
        %v383 = vadd.f32 0.0, %v382
        %384 = vmatprep.mubr.f32.mxu0 0.0
        %385 = vmatmul.mubr.f32.gmra.mrb[0].mxu0 %v246
        %v386 = vpop.f32.mrb[0].mxu0
        %v387 = vadd.f32 0.0, %v386
        %v388 = vpop.f32.mrb[0].mxu0
        %v389 = vadd.f32 0.0, %v388
        %390 = vmatprep.mubr.f32.mxu0 0.0
        %391 = vmatmul.mubr.f32.gmra.mrb[0].mxu0 %v249
        %v392 = vpop.f32.mrb[0].mxu0
        %v393 = vadd.f32 0.0, %v392
        %v394 = vpop.f32.mrb[0].mxu0
        %v395 = vadd.f32 0.0, %v394
        %396 = vmatprep.mubr.f32.mxu0 0.0
        %397 = vmatmul.mubr.f32.gmra.mrb[0].mxu0 %v252
        %v398 = vpop.f32.mrb[0].mxu0
        %v399 = vadd.f32 0.0, %v398
        %v400 = vpop.f32.mrb[0].mxu0
        %v401 = vadd.f32 0.0, %v400
        %402 = vmatprep.mubr.f32.mxu0 0.0
        %403 = vmatmul.mubr.f32.gmra.mrb[0].mxu0 %v255
        %v404 = vpop.f32.mrb[0].mxu0
        %v405 = vadd.f32 0.0, %v404
        %v406 = vpop.f32.mrb[0].mxu0
        %v407 = vadd.f32 0.0, %v406
        %408 = vmatprep.mubr.f32.mxu0 0.0
        %409 = vmatmul.mubr.f32.gmra.mrb[0].mxu0 %v258
        %v410 = vpop.f32.mrb[0].mxu0
        %v411 = vadd.f32 0.0, %v410
        %v412 = vpop.f32.mrb[0].mxu0
        %v413 = vadd.f32 0.0, %v412
        %414 = vmatprep.mubr.f32.mxu0 0.0
        %415 = vmatmul.mubr.f32.gmra.mrb[0].mxu0 %v261
        %v416 = vpop.f32.mrb[0].mxu0
        %v417 = vadd.f32 0.0, %v416
        %v418 = vpop.f32.mrb[0].mxu0
        %v419 = vadd.f32 0.0, %v418
        %420 = vmatprep.mubr.f32.mxu0 0.0
        %421 = vmatmul.mubr.f32.gmra.mrb[0].mxu0 %v264
        %v422 = vpop.f32.mrb[0].mxu0
        %v423 = vadd.f32 0.0, %v422
        %v424 = vpop.f32.mrb[0].mxu0
        %v425 = vadd.f32 0.0, %v424
        %426 = vdwg.mxu0
        %v428 = vsel %vm217, %v169, 0
        %v431 = vsel %vm217, %v170, 0
        %v434 = vsel %vm217, %v171, 0
        %v437 = vsel %vm217, %v172, 0
        %v440 = vsel %vm217, %v173, 0
        %v443 = vsel %vm217, %v174, 0
        %v446 = vsel %vm217, %v175, 0
        %v449 = vsel %vm217, %v176, 0
        %v452 = vsel %vm217, %v177, 0
        %v455 = vsel %vm217, %v178, 0
        %v458 = vsel %vm217, %v179, 0
        %v461 = vsel %vm217, %v180, 0
        %v464 = vsel %vm217, %v181, 0
        %v467 = vsel %vm217, %v182, 0
        %v470 = vsel %vm217, %v183, 0
        %v473 = vsel %vm217, %v184, 0
        %475 = vmatprep.subr.mxu0 %v186
        %476 = vmatpush1.msra.mxu0 %v185
        %477 = vmatprep.subr.mxu0 %v188
        %478 = vmatpush1.msra.mxu0 %v187
        %479 = vmatprep.subr.mxu0 %v190
        %480 = vmatpush1.msra.mxu0 %v189
        %481 = vmatprep.subr.mxu0 %v192
        %482 = vmatpush1.msra.mxu0 %v191
        %483 = vmatprep.subr.mxu0 0.0
        %484 = vmatpush1.msra.mxu0 0.0
        %485 = vmatprep.subr.mxu0 0.0
        %486 = vmatpush1.msra.mxu0 0.0
        %487 = vmatprep.subr.mxu0 0.0
        %488 = vmatpush1.msra.mxu0 0.0
        %489 = vmatprep.subr.mxu0 0.0
        %490 = vmatpush1.msra.mxu0 0.0
        %491 = vmatprep.subr.mxu0 0.0
        %492 = vmatpush1.msra.mxu0 0.0
        %493 = vmatprep.subr.mxu0 0.0
        %494 = vmatpush1.msra.mxu0 0.0
        %495 = vmatprep.subr.mxu0 0.0
        %496 = vmatpush1.msra.mxu0 0.0
        %497 = vmatprep.subr.mxu0 0.0
        %498 = vmatpush1.msra.mxu0 0.0
        %499 = vmatprep.subr.mxu0 0.0
        %500 = vmatpush1.msra.mxu0 0.0
        %501 = vmatprep.subr.mxu0 0.0
        %502 = vmatpush1.msra.mxu0 0.0
        %503 = vmatprep.subr.mxu0 0.0
        %504 = vmatpush1.msra.mxu0 0.0
        %505 = vmatprep.subr.mxu0 0.0
        %506 = vmatpush1.msra.mxu0 0.0
        %507 = vmatprep.subr.mxu0 0.0
        %508 = vmatpush1.msra.mxu0 0.0
        %509 = vmatprep.subr.mxu0 0.0
        %510 = vmatpush1.msra.mxu0 0.0
        %511 = vmatprep.subr.mxu0 0.0
        %512 = vmatpush1.msra.mxu0 0.0
        %513 = vmatprep.subr.mxu0 0.0
        %514 = vmatpush1.msra.mxu0 0.0
        %515 = vmatprep.subr.mxu0 0.0
        %516 = vmatpush1.msra.mxu0 0.0
        %517 = vmatprep.subr.mxu0 0.0
        %518 = vmatpush1.msra.mxu0 0.0
        %519 = vmatprep.subr.mxu0 0.0
        %520 = vmatpush1.msra.mxu0 0.0
        %521 = vmatprep.subr.mxu0 0.0
        %522 = vmatpush1.msra.mxu0 0.0
        %523 = vmatprep.subr.mxu0 0.0
        %524 = vmatpush1.msra.mxu0 0.0
        %525 = vmatprep.subr.mxu0 0.0
        %526 = vmatpush1.msra.mxu0 0.0
        %527 = vmatprep.subr.mxu0 0.0
        %528 = vmatpush1.msra.mxu0 0.0
        %529 = vmatprep.subr.mxu0 0.0
        %530 = vmatpush1.msra.mxu0 0.0
        %531 = vmatprep.subr.mxu0 0.0
        %532 = vmatpush1.msra.mxu0 0.0
        %533 = vmatprep.subr.mxu0 0.0
        %534 = vmatpush1.msra.mxu0 0.0
        %535 = vmatprep.subr.mxu0 0.0
        %536 = vmatpush1.msra.mxu0 0.0
        %537 = vmatprep.subr.mxu0 0.0
        %538 = vmatpush1.msra.mxu0 0.0
        %539 = vmatprep.mubr.f32.mxu0 0.0
        %540 = vmatmul.mubr.f32.gmra.mrb[0].mxu0 %v428
        %v541 = vpop.f32.mrb[0].mxu0
        %v542 = vadd.f32 %v333, %v541
        %v543 = vpop.f32.mrb[0].mxu0
        %v544 = vadd.f32 %v335, %v543
        %545 = vmatprep.mubr.f32.mxu0 0.0
        %546 = vmatmul.mubr.f32.gmra.mrb[0].mxu0 %v431
        %v547 = vpop.f32.mrb[0].mxu0
        %v548 = vadd.f32 %v339, %v547
        %v549 = vpop.f32.mrb[0].mxu0
        %v550 = vadd.f32 %v341, %v549
        %551 = vmatprep.mubr.f32.mxu0 0.0
        %552 = vmatmul.mubr.f32.gmra.mrb[0].mxu0 %v434
        %v553 = vpop.f32.mrb[0].mxu0
        %v554 = vadd.f32 %v345, %v553
        %v555 = vpop.f32.mrb[0].mxu0
        %v556 = vadd.f32 %v347, %v555
        %557 = vmatprep.mubr.f32.mxu0 0.0
        %558 = vmatmul.mubr.f32.gmra.mrb[0].mxu0 %v437
        %v559 = vpop.f32.mrb[0].mxu0
        %v560 = vadd.f32 %v351, %v559
        %v561 = vpop.f32.mrb[0].mxu0
        %v562 = vadd.f32 %v353, %v561
        %563 = vmatprep.mubr.f32.mxu0 0.0
        %564 = vmatmul.mubr.f32.gmra.mrb[0].mxu0 %v440
        %v565 = vpop.f32.mrb[0].mxu0
        %v566 = vadd.f32 %v357, %v565
        %v567 = vpop.f32.mrb[0].mxu0
        %v568 = vadd.f32 %v359, %v567
        %569 = vmatprep.mubr.f32.mxu0 0.0
        %570 = vmatmul.mubr.f32.gmra.mrb[0].mxu0 %v443
        %v571 = vpop.f32.mrb[0].mxu0
        %v572 = vadd.f32 %v363, %v571
        %v573 = vpop.f32.mrb[0].mxu0
        %v574 = vadd.f32 %v365, %v573
        %575 = vmatprep.mubr.f32.mxu0 0.0
        %576 = vmatmul.mubr.f32.gmra.mrb[0].mxu0 %v446
        %v577 = vpop.f32.mrb[0].mxu0
        %v578 = vadd.f32 %v369, %v577
        %v579 = vpop.f32.mrb[0].mxu0
        %v580 = vadd.f32 %v371, %v579
        %581 = vmatprep.mubr.f32.mxu0 0.0
        %582 = vmatmul.mubr.f32.gmra.mrb[0].mxu0 %v449
        %v583 = vpop.f32.mrb[0].mxu0
        %v584 = vadd.f32 %v375, %v583
        %v585 = vpop.f32.mrb[0].mxu0
        %v586 = vadd.f32 %v377, %v585
        %587 = vmatprep.mubr.f32.mxu0 0.0
        %588 = vmatmul.mubr.f32.gmra.mrb[0].mxu0 %v452
        %v589 = vpop.f32.mrb[0].mxu0
        %v590 = vadd.f32 %v381, %v589
        %v591 = vpop.f32.mrb[0].mxu0
        %v592 = vadd.f32 %v383, %v591
        %593 = vmatprep.mubr.f32.mxu0 0.0
        %594 = vmatmul.mubr.f32.gmra.mrb[0].mxu0 %v455
        %v595 = vpop.f32.mrb[0].mxu0
        %v596 = vadd.f32 %v387, %v595
        %v597 = vpop.f32.mrb[0].mxu0
        %v598 = vadd.f32 %v389, %v597
        %599 = vmatprep.mubr.f32.mxu0 0.0
        %600 = vmatmul.mubr.f32.gmra.mrb[0].mxu0 %v458
        %v601 = vpop.f32.mrb[0].mxu0
        %v602 = vadd.f32 %v393, %v601
        %v603 = vpop.f32.mrb[0].mxu0
        %v604 = vadd.f32 %v395, %v603
        %605 = vmatprep.mubr.f32.mxu0 0.0
        %606 = vmatmul.mubr.f32.gmra.mrb[0].mxu0 %v461
        %v607 = vpop.f32.mrb[0].mxu0
        %v608 = vadd.f32 %v399, %v607
        %v609 = vpop.f32.mrb[0].mxu0
        %v610 = vadd.f32 %v401, %v609
        %611 = vmatprep.mubr.f32.mxu0 0.0
        %612 = vmatmul.mubr.f32.gmra.mrb[0].mxu0 %v464
        %v613 = vpop.f32.mrb[0].mxu0
        %v614 = vadd.f32 %v405, %v613
        %v615 = vpop.f32.mrb[0].mxu0
        %v616 = vadd.f32 %v407, %v615
        %617 = vmatprep.mubr.f32.mxu0 0.0
        %618 = vmatmul.mubr.f32.gmra.mrb[0].mxu0 %v467
        %v619 = vpop.f32.mrb[0].mxu0
        %v620 = vadd.f32 %v411, %v619
        %v621 = vpop.f32.mrb[0].mxu0
        %v622 = vadd.f32 %v413, %v621
        %623 = vmatprep.mubr.f32.mxu0 0.0
        %624 = vmatmul.mubr.f32.gmra.mrb[0].mxu0 %v470
        %v625 = vpop.f32.mrb[0].mxu0
        %v626 = vadd.f32 %v417, %v625
        %v627 = vpop.f32.mrb[0].mxu0
        %v628 = vadd.f32 %v419, %v627
        %629 = vmatprep.mubr.f32.mxu0 0.0
        %630 = vmatmul.mubr.f32.gmra.mrb[0].mxu0 %v473
        %v631 = vpop.f32.mrb[0].mxu0
        %v632 = vadd.f32 %v423, %v631
        %v633 = vpop.f32.mrb[0].mxu0
        %v634 = vadd.f32 %v425, %v633
        %635 = vdwg.mxu0
        %v636 = vld [vmem:[%s168 + $0x2] sm:$0xff]
        %v637 = vld [vmem:[%s168 + $0xa] sm:$0xff]
        %v638 = vld [vmem:[%s168 + $0x12] sm:$0xff]
        %v639 = vld [vmem:[%s168 + $0x1a] sm:$0xff]
        %v640 = vld [vmem:[%s168 + $0x22] sm:$0xff]
        %v641 = vld [vmem:[%s168 + $0x2a] sm:$0xff]
        %v642 = vld [vmem:[%s168 + $0x32] sm:$0xff]
        %v643 = vld [vmem:[%s168 + $0x3a] sm:$0xff]
        %v644 = vld [vmem:[%s168 + $0x42] sm:$0xff]
        %v645 = vld [vmem:[%s168 + $0x4a] sm:$0xff]
        %v646 = vld [vmem:[%s168 + $0x52] sm:$0xff]
        %v647 = vld [vmem:[%s168 + $0x5a] sm:$0xff]
        %v648 = vld [vmem:[%s168 + $0x62] sm:$0xff]
        %v649 = vld [vmem:[%s168 + $0x6a] sm:$0xff]
        %v650 = vld [vmem:[%s168 + $0x72] sm:$0xff]
        %v651 = vld [vmem:[%s168 + $0x7a] sm:$0xff]
        %v652 = vld [vmem:[%s1 + $0x80] sm:$0xff]
        %v653 = vld [vmem:[%s1 + $0x88] sm:$0xff]
        %v654 = vld [vmem:[%s1 + $0x90] sm:$0xff]
        %v655 = vld [vmem:[%s1 + $0x98] sm:$0xff]
        %v656 = vld [vmem:[%s1 + $0xa0] sm:$0xff]
        %v657 = vld [vmem:[%s1 + $0xa8] sm:$0xff]
        %v658 = vld [vmem:[%s1 + $0xb0] sm:$0xff]
        %v659 = vld [vmem:[%s1 + $0xb8] sm:$0xff]
        %v661 = vsel %vm217, %v636, 0
        %v664 = vsel %vm217, %v637, 0
        %v667 = vsel %vm217, %v638, 0
        %v670 = vsel %vm217, %v639, 0
        %v673 = vsel %vm217, %v640, 0
        %v676 = vsel %vm217, %v641, 0
        %v679 = vsel %vm217, %v642, 0
        %v682 = vsel %vm217, %v643, 0
        %v685 = vsel %vm217, %v644, 0
        %v688 = vsel %vm217, %v645, 0
        %v691 = vsel %vm217, %v646, 0
        %v694 = vsel %vm217, %v647, 0
        %v697 = vsel %vm217, %v648, 0
        %v700 = vsel %vm217, %v649, 0
        %v703 = vsel %vm217, %v650, 0
        %v706 = vsel %vm217, %v651, 0
        %708 = vmatprep.subr.mxu0 %v653
        %709 = vmatpush1.msra.mxu0 %v652
        %710 = vmatprep.subr.mxu0 %v655
        %711 = vmatpush1.msra.mxu0 %v654
        %712 = vmatprep.subr.mxu0 %v657
        %713 = vmatpush1.msra.mxu0 %v656
        %714 = vmatprep.subr.mxu0 %v659
        %715 = vmatpush1.msra.mxu0 %v658
        %716 = vmatprep.subr.mxu0 0.0
        %717 = vmatpush1.msra.mxu0 0.0
        %718 = vmatprep.subr.mxu0 0.0
        %719 = vmatpush1.msra.mxu0 0.0
        %720 = vmatprep.subr.mxu0 0.0
        %721 = vmatpush1.msra.mxu0 0.0
        %722 = vmatprep.subr.mxu0 0.0
        %723 = vmatpush1.msra.mxu0 0.0
        %724 = vmatprep.subr.mxu0 0.0
        %725 = vmatpush1.msra.mxu0 0.0
        %726 = vmatprep.subr.mxu0 0.0
        %727 = vmatpush1.msra.mxu0 0.0
        %728 = vmatprep.subr.mxu0 0.0
        %729 = vmatpush1.msra.mxu0 0.0
        %730 = vmatprep.subr.mxu0 0.0
        %731 = vmatpush1.msra.mxu0 0.0
        %732 = vmatprep.subr.mxu0 0.0
        %733 = vmatpush1.msra.mxu0 0.0
        %734 = vmatprep.subr.mxu0 0.0
        %735 = vmatpush1.msra.mxu0 0.0
        %736 = vmatprep.subr.mxu0 0.0
        %737 = vmatpush1.msra.mxu0 0.0
        %738 = vmatprep.subr.mxu0 0.0
        %739 = vmatpush1.msra.mxu0 0.0
        %740 = vmatprep.subr.mxu0 0.0
        %741 = vmatpush1.msra.mxu0 0.0
        %742 = vmatprep.subr.mxu0 0.0
        %743 = vmatpush1.msra.mxu0 0.0
        %744 = vmatprep.subr.mxu0 0.0
        %745 = vmatpush1.msra.mxu0 0.0
        %746 = vmatprep.subr.mxu0 0.0
        %747 = vmatpush1.msra.mxu0 0.0
        %748 = vmatprep.subr.mxu0 0.0
        %749 = vmatpush1.msra.mxu0 0.0
        %750 = vmatprep.subr.mxu0 0.0
        %751 = vmatpush1.msra.mxu0 0.0
        %752 = vmatprep.subr.mxu0 0.0
        %753 = vmatpush1.msra.mxu0 0.0
        %754 = vmatprep.subr.mxu0 0.0
        %755 = vmatpush1.msra.mxu0 0.0
        %756 = vmatprep.subr.mxu0 0.0
        %757 = vmatpush1.msra.mxu0 0.0
        %758 = vmatprep.subr.mxu0 0.0
        %759 = vmatpush1.msra.mxu0 0.0
        %760 = vmatprep.subr.mxu0 0.0
        %761 = vmatpush1.msra.mxu0 0.0
        %762 = vmatprep.subr.mxu0 0.0
        %763 = vmatpush1.msra.mxu0 0.0
        %764 = vmatprep.subr.mxu0 0.0
        %765 = vmatpush1.msra.mxu0 0.0
        %766 = vmatprep.subr.mxu0 0.0
        %767 = vmatpush1.msra.mxu0 0.0
        %768 = vmatprep.subr.mxu0 0.0
        %769 = vmatpush1.msra.mxu0 0.0
        %770 = vmatprep.subr.mxu0 0.0
        %771 = vmatpush1.msra.mxu0 0.0
        %772 = vmatprep.mubr.f32.mxu0 0.0
        %773 = vmatmul.mubr.f32.gmra.mrb[0].mxu0 %v661
        %v774 = vpop.f32.mrb[0].mxu0
        %v775 = vadd.f32 0.0, %v774
        %v776 = vpop.f32.mrb[0].mxu0
        %v777 = vadd.f32 0.0, %v776
        %778 = vmatprep.mubr.f32.mxu0 0.0
        %779 = vmatmul.mubr.f32.gmra.mrb[0].mxu0 %v664
        %v780 = vpop.f32.mrb[0].mxu0
        %v781 = vadd.f32 0.0, %v780
        %v782 = vpop.f32.mrb[0].mxu0
        %v783 = vadd.f32 0.0, %v782
        %784 = vmatprep.mubr.f32.mxu0 0.0
        %785 = vmatmul.mubr.f32.gmra.mrb[0].mxu0 %v667
        %v786 = vpop.f32.mrb[0].mxu0
        %v787 = vadd.f32 0.0, %v786
        %v788 = vpop.f32.mrb[0].mxu0
        %v789 = vadd.f32 0.0, %v788
        %790 = vmatprep.mubr.f32.mxu0 0.0
        %791 = vmatmul.mubr.f32.gmra.mrb[0].mxu0 %v670
        %v792 = vpop.f32.mrb[0].mxu0
        %v793 = vadd.f32 0.0, %v792
        %v794 = vpop.f32.mrb[0].mxu0
        %v795 = vadd.f32 0.0, %v794
        %796 = vmatprep.mubr.f32.mxu0 0.0
        %797 = vmatmul.mubr.f32.gmra.mrb[0].mxu0 %v673
        %v798 = vpop.f32.mrb[0].mxu0
        %v799 = vadd.f32 0.0, %v798
        %v800 = vpop.f32.mrb[0].mxu0
        %v801 = vadd.f32 0.0, %v800
        %802 = vmatprep.mubr.f32.mxu0 0.0
        %803 = vmatmul.mubr.f32.gmra.mrb[0].mxu0 %v676
        %v804 = vpop.f32.mrb[0].mxu0
        %v805 = vadd.f32 0.0, %v804
        %v806 = vpop.f32.mrb[0].mxu0
        %v807 = vadd.f32 0.0, %v806
        %808 = vmatprep.mubr.f32.mxu0 0.0
        %809 = vmatmul.mubr.f32.gmra.mrb[0].mxu0 %v679
        %v810 = vpop.f32.mrb[0].mxu0
        %v811 = vadd.f32 0.0, %v810
        %v812 = vpop.f32.mrb[0].mxu0
        %v813 = vadd.f32 0.0, %v812
        %814 = vmatprep.mubr.f32.mxu0 0.0
        %815 = vmatmul.mubr.f32.gmra.mrb[0].mxu0 %v682
        %v816 = vpop.f32.mrb[0].mxu0
        %v817 = vadd.f32 0.0, %v816
        %v818 = vpop.f32.mrb[0].mxu0
        %v819 = vadd.f32 0.0, %v818
        %820 = vmatprep.mubr.f32.mxu0 0.0
        %821 = vmatmul.mubr.f32.gmra.mrb[0].mxu0 %v685
        %v822 = vpop.f32.mrb[0].mxu0
        %v823 = vadd.f32 0.0, %v822
        %v824 = vpop.f32.mrb[0].mxu0
        %v825 = vadd.f32 0.0, %v824
        %826 = vmatprep.mubr.f32.mxu0 0.0
        %827 = vmatmul.mubr.f32.gmra.mrb[0].mxu0 %v688
        %v828 = vpop.f32.mrb[0].mxu0
        %v829 = vadd.f32 0.0, %v828
        %v830 = vpop.f32.mrb[0].mxu0
        %v831 = vadd.f32 0.0, %v830
        %832 = vmatprep.mubr.f32.mxu0 0.0
        %833 = vmatmul.mubr.f32.gmra.mrb[0].mxu0 %v691
        %v834 = vpop.f32.mrb[0].mxu0
        %v835 = vadd.f32 0.0, %v834
        %v836 = vpop.f32.mrb[0].mxu0
        %v837 = vadd.f32 0.0, %v836
        %838 = vmatprep.mubr.f32.mxu0 0.0
        %839 = vmatmul.mubr.f32.gmra.mrb[0].mxu0 %v694
        %v840 = vpop.f32.mrb[0].mxu0
        %v841 = vadd.f32 0.0, %v840
        %v842 = vpop.f32.mrb[0].mxu0
        %v843 = vadd.f32 0.0, %v842
        %844 = vmatprep.mubr.f32.mxu0 0.0
        %845 = vmatmul.mubr.f32.gmra.mrb[0].mxu0 %v697
        %v846 = vpop.f32.mrb[0].mxu0
        %v847 = vadd.f32 0.0, %v846
        %v848 = vpop.f32.mrb[0].mxu0
        %v849 = vadd.f32 0.0, %v848
        %850 = vmatprep.mubr.f32.mxu0 0.0
        %851 = vmatmul.mubr.f32.gmra.mrb[0].mxu0 %v700
        %v852 = vpop.f32.mrb[0].mxu0
        %v853 = vadd.f32 0.0, %v852
        %v854 = vpop.f32.mrb[0].mxu0
        %v855 = vadd.f32 0.0, %v854
        %856 = vmatprep.mubr.f32.mxu0 0.0
        %857 = vmatmul.mubr.f32.gmra.mrb[0].mxu0 %v703
        %v858 = vpop.f32.mrb[0].mxu0
        %v859 = vadd.f32 0.0, %v858
        %v860 = vpop.f32.mrb[0].mxu0
        %v861 = vadd.f32 0.0, %v860
        %862 = vmatprep.mubr.f32.mxu0 0.0
        %863 = vmatmul.mubr.f32.gmra.mrb[0].mxu0 %v706
        %v864 = vpop.f32.mrb[0].mxu0
        %v865 = vadd.f32 0.0, %v864
        %v866 = vpop.f32.mrb[0].mxu0
        %v867 = vadd.f32 0.0, %v866
        %868 = vdwg.mxu0
        %v869 = vadd.f32 %v542, %v775
        %v870 = vadd.f32 %v544, %v777
        %v871 = vadd.f32 %v548, %v781
        %v872 = vadd.f32 %v550, %v783
        %v873 = vadd.f32 %v554, %v787
        %v874 = vadd.f32 %v556, %v789
        %v875 = vadd.f32 %v560, %v793
        %v876 = vadd.f32 %v562, %v795
        %v877 = vadd.f32 %v566, %v799
        %v878 = vadd.f32 %v568, %v801
        %v879 = vadd.f32 %v572, %v805
        %v880 = vadd.f32 %v574, %v807
        %v881 = vadd.f32 %v578, %v811
        %v882 = vadd.f32 %v580, %v813
        %v883 = vadd.f32 %v584, %v817
        %v884 = vadd.f32 %v586, %v819
        %v885 = vadd.f32 %v590, %v823
        %v886 = vadd.f32 %v592, %v825
        %v887 = vadd.f32 %v596, %v829
        %v888 = vadd.f32 %v598, %v831
        %v889 = vadd.f32 %v602, %v835
        %v890 = vadd.f32 %v604, %v837
        %v891 = vadd.f32 %v608, %v841
        %v892 = vadd.f32 %v610, %v843
        %v893 = vadd.f32 %v614, %v847
        %v894 = vadd.f32 %v616, %v849
        %v895 = vadd.f32 %v620, %v853
        %v896 = vadd.f32 %v622, %v855
        %v897 = vadd.f32 %v626, %v859
        %v898 = vadd.f32 %v628, %v861
        %v899 = vadd.f32 %v632, %v865
        %v900 = vadd.f32 %v634, %v867
        %v901 = vld [vmem:[%s168 + $0x3] sm:$0xff]
        %v902 = vld [vmem:[%s168 + $0xb] sm:$0xff]
        %v903 = vld [vmem:[%s168 + $0x13] sm:$0xff]
        %v904 = vld [vmem:[%s168 + $0x1b] sm:$0xff]
        %v905 = vld [vmem:[%s168 + $0x23] sm:$0xff]
        %v906 = vld [vmem:[%s168 + $0x2b] sm:$0xff]
        %v907 = vld [vmem:[%s168 + $0x33] sm:$0xff]
        %v908 = vld [vmem:[%s168 + $0x3b] sm:$0xff]
        %v909 = vld [vmem:[%s168 + $0x43] sm:$0xff]
        %v910 = vld [vmem:[%s168 + $0x4b] sm:$0xff]
        %v911 = vld [vmem:[%s168 + $0x53] sm:$0xff]
        %v912 = vld [vmem:[%s168 + $0x5b] sm:$0xff]
        %v913 = vld [vmem:[%s168 + $0x63] sm:$0xff]
        %v914 = vld [vmem:[%s168 + $0x6b] sm:$0xff]
        %v915 = vld [vmem:[%s168 + $0x73] sm:$0xff]
        %v916 = vld [vmem:[%s168 + $0x7b] sm:$0xff]
        %v917 = vld [vmem:[%s1 + $0xc0] sm:$0xff]
        %v918 = vld [vmem:[%s1 + $0xc8] sm:$0xff]
        %v919 = vld [vmem:[%s1 + $0xd0] sm:$0xff]
        %v920 = vld [vmem:[%s1 + $0xd8] sm:$0xff]
        %v921 = vld [vmem:[%s1 + $0xe0] sm:$0xff]
        %v922 = vld [vmem:[%s1 + $0xe8] sm:$0xff]
        %v923 = vld [vmem:[%s1 + $0xf0] sm:$0xff]
        %v924 = vld [vmem:[%s1 + $0xf8] sm:$0xff]
        %v926 = vsel %vm217, %v901, 0
        %v929 = vsel %vm217, %v902, 0
        %v932 = vsel %vm217, %v903, 0
        %v935 = vsel %vm217, %v904, 0
        %v938 = vsel %vm217, %v905, 0
        %v941 = vsel %vm217, %v906, 0
        %v944 = vsel %vm217, %v907, 0
        %v947 = vsel %vm217, %v908, 0
        %v950 = vsel %vm217, %v909, 0
        %v953 = vsel %vm217, %v910, 0
        %v956 = vsel %vm217, %v911, 0
        %v959 = vsel %vm217, %v912, 0
        %v962 = vsel %vm217, %v913, 0
        %v965 = vsel %vm217, %v914, 0
        %v968 = vsel %vm217, %v915, 0
        %v971 = vsel %vm217, %v916, 0
        %973 = vmatprep.subr.mxu0 %v918
        %974 = vmatpush1.msra.mxu0 %v917
        %975 = vmatprep.subr.mxu0 %v920
        %976 = vmatpush1.msra.mxu0 %v919
        %977 = vmatprep.subr.mxu0 %v922
        %978 = vmatpush1.msra.mxu0 %v921
        %979 = vmatprep.subr.mxu0 %v924
        %980 = vmatpush1.msra.mxu0 %v923
        %981 = vmatprep.subr.mxu0 0.0
        %982 = vmatpush1.msra.mxu0 0.0
        %983 = vmatprep.subr.mxu0 0.0
        %984 = vmatpush1.msra.mxu0 0.0
        %985 = vmatprep.subr.mxu0 0.0
        %986 = vmatpush1.msra.mxu0 0.0
        %987 = vmatprep.subr.mxu0 0.0
        %988 = vmatpush1.msra.mxu0 0.0
        %989 = vmatprep.subr.mxu0 0.0
        %990 = vmatpush1.msra.mxu0 0.0
        %991 = vmatprep.subr.mxu0 0.0
        %992 = vmatpush1.msra.mxu0 0.0
        %993 = vmatprep.subr.mxu0 0.0
        %994 = vmatpush1.msra.mxu0 0.0
        %995 = vmatprep.subr.mxu0 0.0
        %996 = vmatpush1.msra.mxu0 0.0
        %997 = vmatprep.subr.mxu0 0.0
        %998 = vmatpush1.msra.mxu0 0.0
        %999 = vmatprep.subr.mxu0 0.0
        %1000 = vmatpush1.msra.mxu0 0.0
        %1001 = vmatprep.subr.mxu0 0.0
        %1002 = vmatpush1.msra.mxu0 0.0
        %1003 = vmatprep.subr.mxu0 0.0
        %1004 = vmatpush1.msra.mxu0 0.0
        %1005 = vmatprep.subr.mxu0 0.0
        %1006 = vmatpush1.msra.mxu0 0.0
        %1007 = vmatprep.subr.mxu0 0.0
        %1008 = vmatpush1.msra.mxu0 0.0
        %1009 = vmatprep.subr.mxu0 0.0
        %1010 = vmatpush1.msra.mxu0 0.0
        %1011 = vmatprep.subr.mxu0 0.0
        %1012 = vmatpush1.msra.mxu0 0.0
        %1013 = vmatprep.subr.mxu0 0.0
        %1014 = vmatpush1.msra.mxu0 0.0
        %1015 = vmatprep.subr.mxu0 0.0
        %1016 = vmatpush1.msra.mxu0 0.0
        %1017 = vmatprep.subr.mxu0 0.0
        %1018 = vmatpush1.msra.mxu0 0.0
        %1019 = vmatprep.subr.mxu0 0.0
        %1020 = vmatpush1.msra.mxu0 0.0
        %1021 = vmatprep.subr.mxu0 0.0
        %1022 = vmatpush1.msra.mxu0 0.0
        %1023 = vmatprep.subr.mxu0 0.0
        %1024 = vmatpush1.msra.mxu0 0.0
        %1025 = vmatprep.subr.mxu0 0.0
        %1026 = vmatpush1.msra.mxu0 0.0
        %1027 = vmatprep.subr.mxu0 0.0
        %1028 = vmatpush1.msra.mxu0 0.0
        %1029 = vmatprep.subr.mxu0 0.0
        %1030 = vmatpush1.msra.mxu0 0.0
        %1031 = vmatprep.subr.mxu0 0.0
        %1032 = vmatpush1.msra.mxu0 0.0
        %1033 = vmatprep.subr.mxu0 0.0
        %1034 = vmatpush1.msra.mxu0 0.0
        %1035 = vmatprep.subr.mxu0 0.0
        %1036 = vmatpush1.msra.mxu0 0.0
        %1037 = vmatprep.mubr.f32.mxu0 0.0
        %1038 = vmatmul.mubr.f32.gmra.mrb[0].mxu0 %v926
        %v1039 = vpop.f32.mrb[0].mxu0
        %v1040 = vadd.f32 0.0, %v1039
        %v1041 = vpop.f32.mrb[0].mxu0
        %v1042 = vadd.f32 0.0, %v1041
        %1043 = vmatprep.mubr.f32.mxu0 0.0
        %1044 = vmatmul.mubr.f32.gmra.mrb[0].mxu0 %v929
        %v1045 = vpop.f32.mrb[0].mxu0
        %v1046 = vadd.f32 0.0, %v1045
        %v1047 = vpop.f32.mrb[0].mxu0
        %v1048 = vadd.f32 0.0, %v1047
        %1049 = vmatprep.mubr.f32.mxu0 0.0
        %1050 = vmatmul.mubr.f32.gmra.mrb[0].mxu0 %v932
        %v1051 = vpop.f32.mrb[0].mxu0
        %v1052 = vadd.f32 0.0, %v1051
        %v1053 = vpop.f32.mrb[0].mxu0
        %v1054 = vadd.f32 0.0, %v1053
        %1055 = vmatprep.mubr.f32.mxu0 0.0
        %1056 = vmatmul.mubr.f32.gmra.mrb[0].mxu0 %v935
        %v1057 = vpop.f32.mrb[0].mxu0
        %v1058 = vadd.f32 0.0, %v1057
        %v1059 = vpop.f32.mrb[0].mxu0
        %v1060 = vadd.f32 0.0, %v1059
        %1061 = vmatprep.mubr.f32.mxu0 0.0
        %1062 = vmatmul.mubr.f32.gmra.mrb[0].mxu0 %v938
        %v1063 = vpop.f32.mrb[0].mxu0
        %v1064 = vadd.f32 0.0, %v1063
        %v1065 = vpop.f32.mrb[0].mxu0
        %v1066 = vadd.f32 0.0, %v1065
        %1067 = vmatprep.mubr.f32.mxu0 0.0
        %1068 = vmatmul.mubr.f32.gmra.mrb[0].mxu0 %v941
        %v1069 = vpop.f32.mrb[0].mxu0
        %v1070 = vadd.f32 0.0, %v1069
        %v1071 = vpop.f32.mrb[0].mxu0
        %v1072 = vadd.f32 0.0, %v1071
        %1073 = vmatprep.mubr.f32.mxu0 0.0
        %1074 = vmatmul.mubr.f32.gmra.mrb[0].mxu0 %v944
        %v1075 = vpop.f32.mrb[0].mxu0
        %v1076 = vadd.f32 0.0, %v1075
        %v1077 = vpop.f32.mrb[0].mxu0
        %v1078 = vadd.f32 0.0, %v1077
        %1079 = vmatprep.mubr.f32.mxu0 0.0
        %1080 = vmatmul.mubr.f32.gmra.mrb[0].mxu0 %v947
        %v1081 = vpop.f32.mrb[0].mxu0
        %v1082 = vadd.f32 0.0, %v1081
        %v1083 = vpop.f32.mrb[0].mxu0
        %v1084 = vadd.f32 0.0, %v1083
        %1085 = vmatprep.mubr.f32.mxu0 0.0
        %1086 = vmatmul.mubr.f32.gmra.mrb[0].mxu0 %v950
        %v1087 = vpop.f32.mrb[0].mxu0
        %v1088 = vadd.f32 0.0, %v1087
        %v1089 = vpop.f32.mrb[0].mxu0
        %v1090 = vadd.f32 0.0, %v1089
        %1091 = vmatprep.mubr.f32.mxu0 0.0
        %1092 = vmatmul.mubr.f32.gmra.mrb[0].mxu0 %v953
        %v1093 = vpop.f32.mrb[0].mxu0
        %v1094 = vadd.f32 0.0, %v1093
        %v1095 = vpop.f32.mrb[0].mxu0
        %v1096 = vadd.f32 0.0, %v1095
        %1097 = vmatprep.mubr.f32.mxu0 0.0
        %1098 = vmatmul.mubr.f32.gmra.mrb[0].mxu0 %v956
        %v1099 = vpop.f32.mrb[0].mxu0
        %v1100 = vadd.f32 0.0, %v1099
        %v1101 = vpop.f32.mrb[0].mxu0
        %v1102 = vadd.f32 0.0, %v1101
        %1103 = vmatprep.mubr.f32.mxu0 0.0
        %1104 = vmatmul.mubr.f32.gmra.mrb[0].mxu0 %v959
        %v1105 = vpop.f32.mrb[0].mxu0
        %v1106 = vadd.f32 0.0, %v1105
        %v1107 = vpop.f32.mrb[0].mxu0
        %v1108 = vadd.f32 0.0, %v1107
        %1109 = vmatprep.mubr.f32.mxu0 0.0
        %1110 = vmatmul.mubr.f32.gmra.mrb[0].mxu0 %v962
        %v1111 = vpop.f32.mrb[0].mxu0
        %v1112 = vadd.f32 0.0, %v1111
        %v1113 = vpop.f32.mrb[0].mxu0
        %v1114 = vadd.f32 0.0, %v1113
        %1115 = vmatprep.mubr.f32.mxu0 0.0
        %1116 = vmatmul.mubr.f32.gmra.mrb[0].mxu0 %v965
        %v1117 = vpop.f32.mrb[0].mxu0
        %v1118 = vadd.f32 0.0, %v1117
        %v1119 = vpop.f32.mrb[0].mxu0
        %v1120 = vadd.f32 0.0, %v1119
        %1121 = vmatprep.mubr.f32.mxu0 0.0
        %1122 = vmatmul.mubr.f32.gmra.mrb[0].mxu0 %v968
        %v1123 = vpop.f32.mrb[0].mxu0
        %v1124 = vadd.f32 0.0, %v1123
        %v1125 = vpop.f32.mrb[0].mxu0
        %v1126 = vadd.f32 0.0, %v1125
        %1127 = vmatprep.mubr.f32.mxu0 0.0
        %1128 = vmatmul.mubr.f32.gmra.mrb[0].mxu0 %v971
        %v1129 = vpop.f32.mrb[0].mxu0
        %v1130 = vadd.f32 0.0, %v1129
        %v1131 = vpop.f32.mrb[0].mxu0
        %v1132 = vadd.f32 0.0, %v1131
        %1133 = vdwg.mxu0
        %v1134 = vadd.f32 %v869, %v1040
        %v1135 = vadd.f32 %v870, %v1042
        %v1136 = vadd.f32 %v871, %v1046
        %v1137 = vadd.f32 %v872, %v1048
        %v1138 = vadd.f32 %v873, %v1052
        %v1139 = vadd.f32 %v874, %v1054
        %v1140 = vadd.f32 %v875, %v1058
        %v1141 = vadd.f32 %v876, %v1060
        %v1142 = vadd.f32 %v877, %v1064
        %v1143 = vadd.f32 %v878, %v1066
        %v1144 = vadd.f32 %v879, %v1070
        %v1145 = vadd.f32 %v880, %v1072
        %v1146 = vadd.f32 %v881, %v1076
        %v1147 = vadd.f32 %v882, %v1078
        %v1148 = vadd.f32 %v883, %v1082
        %v1149 = vadd.f32 %v884, %v1084
        %v1150 = vadd.f32 %v885, %v1088
        %v1151 = vadd.f32 %v886, %v1090
        %v1152 = vadd.f32 %v887, %v1094
        %v1153 = vadd.f32 %v888, %v1096
        %v1154 = vadd.f32 %v889, %v1100
        %v1155 = vadd.f32 %v890, %v1102
        %v1156 = vadd.f32 %v891, %v1106
        %v1157 = vadd.f32 %v892, %v1108
        %v1158 = vadd.f32 %v893, %v1112
        %v1159 = vadd.f32 %v894, %v1114
        %v1160 = vadd.f32 %v895, %v1118
        %v1161 = vadd.f32 %v896, %v1120
        %v1162 = vadd.f32 %v897, %v1124
        %v1163 = vadd.f32 %v898, %v1126
        %v1164 = vadd.f32 %v899, %v1130
        %v1165 = vadd.f32 %v900, %v1132
        %v1166 = vmul.f32 %v1134, %v1134
        %v1167 = vmul.f32 %v1136, %v1136
        %v1168 = vmul.f32 %v1138, %v1138
        %v1169 = vmul.f32 %v1140, %v1140
        %v1170 = vmul.f32 %v1142, %v1142
        %v1171 = vmul.f32 %v1144, %v1144
        %v1172 = vmul.f32 %v1146, %v1146
        %v1173 = vmul.f32 %v1148, %v1148
        %v1174 = vmul.f32 %v1150, %v1150
        %v1175 = vmul.f32 %v1152, %v1152
        %v1176 = vmul.f32 %v1154, %v1154
        %v1177 = vmul.f32 %v1156, %v1156
        %v1178 = vmul.f32 %v1158, %v1158
        %v1179 = vmul.f32 %v1160, %v1160
        %v1180 = vmul.f32 %v1162, %v1162
        %v1181 = vmul.f32 %v1164, %v1164
        %v1182 = vmul.f32 %v1135, %v1135
        %v1183 = vmul.f32 %v1137, %v1137
        %v1184 = vmul.f32 %v1139, %v1139
        %v1185 = vmul.f32 %v1141, %v1141
        %v1186 = vmul.f32 %v1143, %v1143
        %v1187 = vmul.f32 %v1145, %v1145
        %v1188 = vmul.f32 %v1147, %v1147
        %v1189 = vmul.f32 %v1149, %v1149
        %v1190 = vmul.f32 %v1151, %v1151
        %v1191 = vmul.f32 %v1153, %v1153
        %v1192 = vmul.f32 %v1155, %v1155
        %v1193 = vmul.f32 %v1157, %v1157
        %v1194 = vmul.f32 %v1159, %v1159
        %v1195 = vmul.f32 %v1161, %v1161
        %v1196 = vmul.f32 %v1163, %v1163
        %v1197 = vmul.f32 %v1165, %v1165
        %v1198 = vadd.f32 %v1166, %v1182
        %v1199 = vadd.f32 %v1167, %v1183
        %v1200 = vadd.f32 %v1168, %v1184
        %v1201 = vadd.f32 %v1169, %v1185
        %v1202 = vadd.f32 %v1170, %v1186
        %v1203 = vadd.f32 %v1171, %v1187
        %v1204 = vadd.f32 %v1172, %v1188
        %v1205 = vadd.f32 %v1173, %v1189
        %v1206 = vadd.f32 %v1174, %v1190
        %v1207 = vadd.f32 %v1175, %v1191
        %v1208 = vadd.f32 %v1176, %v1192
        %v1209 = vadd.f32 %v1177, %v1193
        %v1210 = vadd.f32 %v1178, %v1194
        %v1211 = vadd.f32 %v1179, %v1195
        %v1212 = vadd.f32 %v1180, %v1196
        %v1213 = vadd.f32 %v1181, %v1197
        %v1214 = vld [vmem:[%s2] sm:$0xff]
        %v1215 = vld [vmem:[%s2 + $0x8] sm:$0xff]
        %v1216 = vld [vmem:[%s2 + $0x10] sm:$0xff]
        %v1217 = vld [vmem:[%s2 + $0x18] sm:$0xff]
        %v1218 = vld [vmem:[%s2 + $0x20] sm:$0xff]
        %v1219 = vld [vmem:[%s2 + $0x28] sm:$0xff]
        %v1220 = vld [vmem:[%s2 + $0x30] sm:$0xff]
        %v1221 = vld [vmem:[%s2 + $0x38] sm:$0xff]
        %v1222 = vld [vmem:[%s2 + $0x40] sm:$0xff]
        %v1223 = vld [vmem:[%s2 + $0x48] sm:$0xff]
        %v1224 = vld [vmem:[%s2 + $0x50] sm:$0xff]
        %v1225 = vld [vmem:[%s2 + $0x58] sm:$0xff]
        %v1226 = vld [vmem:[%s2 + $0x60] sm:$0xff]
        %v1227 = vld [vmem:[%s2 + $0x68] sm:$0xff]
        %v1228 = vld [vmem:[%s2 + $0x70] sm:$0xff]
        %v1229 = vld [vmem:[%s2 + $0x78] sm:$0xff]
        %1230 = vmatprep.subr.mxu0 0.0
        %1231 = vmatpush1.msra.mxu0 %v1214
        %1232 = vmatprep.subr.mxu0 0.0
        %1233 = vmatpush1.msra.mxu0 %v1215
        %1234 = vmatprep.subr.mxu0 0.0
        %1235 = vmatpush1.msra.mxu0 %v1216
        %1236 = vmatprep.subr.mxu0 0.0
        %1237 = vmatpush1.msra.mxu0 %v1217
        %1238 = vmatprep.subr.mxu0 0.0
        %1239 = vmatpush1.msra.mxu0 %v1218
        %1240 = vmatprep.subr.mxu0 0.0
        %1241 = vmatpush1.msra.mxu0 %v1219
        %1242 = vmatprep.subr.mxu0 0.0
        %1243 = vmatpush1.msra.mxu0 %v1220
        %1244 = vmatprep.subr.mxu0 0.0
        %1245 = vmatpush1.msra.mxu0 %v1221
        %1246 = vmatprep.subr.mxu0 0.0
        %1247 = vmatpush1.msra.mxu0 %v1222
        %1248 = vmatprep.subr.mxu0 0.0
        %1249 = vmatpush1.msra.mxu0 %v1223
        %1250 = vmatprep.subr.mxu0 0.0
        %1251 = vmatpush1.msra.mxu0 %v1224
        %1252 = vmatprep.subr.mxu0 0.0
        %1253 = vmatpush1.msra.mxu0 %v1225
        %1254 = vmatprep.subr.mxu0 0.0
        %1255 = vmatpush1.msra.mxu0 %v1226
        %1256 = vmatprep.subr.mxu0 0.0
        %1257 = vmatpush1.msra.mxu0 %v1227
        %1258 = vmatprep.subr.mxu0 0.0
        %1259 = vmatpush1.msra.mxu0 %v1228
        %1260 = vmatprep.subr.mxu0 0.0
        %1261 = vmatpush1.msra.mxu0 %v1229
        %1262 = vmatprep.subr.mxu0 0.0
        %1263 = vmatpush1.msra.mxu0 0.0
        %1264 = vmatprep.subr.mxu0 0.0
        %1265 = vmatpush1.msra.mxu0 0.0
        %1266 = vmatprep.subr.mxu0 0.0
        %1267 = vmatpush1.msra.mxu0 0.0
        %1268 = vmatprep.subr.mxu0 0.0
        %1269 = vmatpush1.msra.mxu0 0.0
        %1270 = vmatprep.subr.mxu0 0.0
        %1271 = vmatpush1.msra.mxu0 0.0
        %1272 = vmatprep.subr.mxu0 0.0
        %1273 = vmatpush1.msra.mxu0 0.0
        %1274 = vmatprep.subr.mxu0 0.0
        %1275 = vmatpush1.msra.mxu0 0.0
        %1276 = vmatprep.subr.mxu0 0.0
        %1277 = vmatpush1.msra.mxu0 0.0
        %1278 = vmatprep.subr.mxu0 0.0
        %1279 = vmatpush1.msra.mxu0 0.0
        %1280 = vmatprep.subr.mxu0 0.0
        %1281 = vmatpush1.msra.mxu0 0.0
        %1282 = vmatprep.subr.mxu0 0.0
        %1283 = vmatpush1.msra.mxu0 0.0
        %1284 = vmatprep.subr.mxu0 0.0
        %1285 = vmatpush1.msra.mxu0 0.0
        %1286 = vmatprep.subr.mxu0 0.0
        %1287 = vmatpush1.msra.mxu0 0.0
        %1288 = vmatprep.subr.mxu0 0.0
        %1289 = vmatpush1.msra.mxu0 0.0
        %1290 = vmatprep.subr.mxu0 0.0
        %1291 = vmatpush1.msra.mxu0 0.0
        %1292 = vmatprep.subr.mxu0 0.0
        %1293 = vmatpush1.msra.mxu0 0.0
        %1294 = vmatprep.mubr.f32.mxu0 0.0
        %1295 = vmatmul.mubr.f32.gmra.mrb[0].mxu0 %v1198
        %v1296 = vpop.f32.mrb[0].mxu0
        %v1297 = vadd.f32 0.0, %v1296
        %v1298 = vpop.f32.mrb[0].mxu0
        %1299 = vmatprep.mubr.f32.mxu0 0.0
        %1300 = vmatmul.mubr.f32.gmra.mrb[0].mxu0 %v1199
        %v1301 = vpop.f32.mrb[0].mxu0
        %v1302 = vadd.f32 0.0, %v1301
        %v1303 = vpop.f32.mrb[0].mxu0
        %1304 = vmatprep.mubr.f32.mxu0 0.0
        %1305 = vmatmul.mubr.f32.gmra.mrb[0].mxu0 %v1200
        %v1306 = vpop.f32.mrb[0].mxu0
        %v1307 = vadd.f32 0.0, %v1306
        %v1308 = vpop.f32.mrb[0].mxu0
        %1309 = vmatprep.mubr.f32.mxu0 0.0
        %1310 = vmatmul.mubr.f32.gmra.mrb[0].mxu0 %v1201
        %v1311 = vpop.f32.mrb[0].mxu0
        %v1312 = vadd.f32 0.0, %v1311
        %v1313 = vpop.f32.mrb[0].mxu0
        %1314 = vmatprep.mubr.f32.mxu0 0.0
        %1315 = vmatmul.mubr.f32.gmra.mrb[0].mxu0 %v1202
        %v1316 = vpop.f32.mrb[0].mxu0
        %v1317 = vadd.f32 0.0, %v1316
        %v1318 = vpop.f32.mrb[0].mxu0
        %1319 = vmatprep.mubr.f32.mxu0 0.0
        %1320 = vmatmul.mubr.f32.gmra.mrb[0].mxu0 %v1203
        %v1321 = vpop.f32.mrb[0].mxu0
        %v1322 = vadd.f32 0.0, %v1321
        %v1323 = vpop.f32.mrb[0].mxu0
        %1324 = vmatprep.mubr.f32.mxu0 0.0
        %1325 = vmatmul.mubr.f32.gmra.mrb[0].mxu0 %v1204
        %v1326 = vpop.f32.mrb[0].mxu0
        %v1327 = vadd.f32 0.0, %v1326
        %v1328 = vpop.f32.mrb[0].mxu0
        %1329 = vmatprep.mubr.f32.mxu0 0.0
        %1330 = vmatmul.mubr.f32.gmra.mrb[0].mxu0 %v1205
        %v1331 = vpop.f32.mrb[0].mxu0
        %v1332 = vadd.f32 0.0, %v1331
        %v1333 = vpop.f32.mrb[0].mxu0
        %1334 = vmatprep.mubr.f32.mxu0 0.0
        %1335 = vmatmul.mubr.f32.gmra.mrb[0].mxu0 %v1206
        %v1336 = vpop.f32.mrb[0].mxu0
        %v1337 = vadd.f32 0.0, %v1336
        %v1338 = vpop.f32.mrb[0].mxu0
        %1339 = vmatprep.mubr.f32.mxu0 0.0
        %1340 = vmatmul.mubr.f32.gmra.mrb[0].mxu0 %v1207
        %v1341 = vpop.f32.mrb[0].mxu0
        %v1342 = vadd.f32 0.0, %v1341
        %v1343 = vpop.f32.mrb[0].mxu0
        %1344 = vmatprep.mubr.f32.mxu0 0.0
        %1345 = vmatmul.mubr.f32.gmra.mrb[0].mxu0 %v1208
        %v1346 = vpop.f32.mrb[0].mxu0
        %v1347 = vadd.f32 0.0, %v1346
        %v1348 = vpop.f32.mrb[0].mxu0
        %1349 = vmatprep.mubr.f32.mxu0 0.0
        %1350 = vmatmul.mubr.f32.gmra.mrb[0].mxu0 %v1209
        %v1351 = vpop.f32.mrb[0].mxu0
        %v1352 = vadd.f32 0.0, %v1351
        %v1353 = vpop.f32.mrb[0].mxu0
        %1354 = vmatprep.mubr.f32.mxu0 0.0
        %1355 = vmatmul.mubr.f32.gmra.mrb[0].mxu0 %v1210
        %v1356 = vpop.f32.mrb[0].mxu0
        %v1357 = vadd.f32 0.0, %v1356
        %v1358 = vpop.f32.mrb[0].mxu0
        %1359 = vmatprep.mubr.f32.mxu0 0.0
        %1360 = vmatmul.mubr.f32.gmra.mrb[0].mxu0 %v1211
        %v1361 = vpop.f32.mrb[0].mxu0
        %v1362 = vadd.f32 0.0, %v1361
        %v1363 = vpop.f32.mrb[0].mxu0
        %1364 = vmatprep.mubr.f32.mxu0 0.0
        %1365 = vmatmul.mubr.f32.gmra.mrb[0].mxu0 %v1212
        %v1366 = vpop.f32.mrb[0].mxu0
        %v1367 = vadd.f32 0.0, %v1366
        %v1368 = vpop.f32.mrb[0].mxu0
        %1369 = vmatprep.mubr.f32.mxu0 0.0
        %1370 = vmatmul.mubr.f32.gmra.mrb[0].mxu0 %v1213
        %v1371 = vpop.f32.mrb[0].mxu0
        %v1372 = vadd.f32 0.0, %v1371
        %v1373 = vpop.f32.mrb[0].mxu0
        %1374 = vdwg.mxu0
        %v1375 = vmax.f32 %v1297, 1e-10
        %v1376 = vmax.f32 %v1302, 1e-10
        %v1377 = vmax.f32 %v1307, 1e-10
        %v1378 = vmax.f32 %v1312, 1e-10
        %v1379 = vmax.f32 %v1317, 1e-10
        %v1380 = vmax.f32 %v1322, 1e-10
        %v1381 = vmax.f32 %v1327, 1e-10
        %v1382 = vmax.f32 %v1332, 1e-10
        %v1383 = vmax.f32 %v1337, 1e-10
        %v1384 = vmax.f32 %v1342, 1e-10
        %v1385 = vmax.f32 %v1347, 1e-10
        %v1386 = vmax.f32 %v1352, 1e-10
        %v1387 = vmax.f32 %v1357, 1e-10
        %v1388 = vmax.f32 %v1362, 1e-10
        %v1389 = vmax.f32 %v1367, 1e-10
        %v1390 = vmax.f32 %v1372, 1e-10
        %v1391 = vlog2.pop %v1375
        %v1392 = vmul.f32 %v1391, 0.6931472
        %v1393 = vlog2.pop %v1376
        %v1394 = vmul.f32 %v1393, 0.6931472
        %v1395 = vlog2.pop %v1377
        %v1396 = vmul.f32 %v1395, 0.6931472
        %v1397 = vlog2.pop %v1378
        %v1398 = vmul.f32 %v1397, 0.6931472
        %v1399 = vlog2.pop %v1379
        %v1400 = vmul.f32 %v1399, 0.6931472
        %v1401 = vlog2.pop %v1380
        %v1402 = vmul.f32 %v1401, 0.6931472
        %v1403 = vlog2.pop %v1381
        %v1404 = vmul.f32 %v1403, 0.6931472
        %v1405 = vlog2.pop %v1382
        %v1406 = vmul.f32 %v1405, 0.6931472
        %v1407 = vlog2.pop %v1383
        %v1408 = vmul.f32 %v1407, 0.6931472
        %v1409 = vlog2.pop %v1384
        %v1410 = vmul.f32 %v1409, 0.6931472
        %v1411 = vlog2.pop %v1385
        %v1412 = vmul.f32 %v1411, 0.6931472
        %v1413 = vlog2.pop %v1386
        %v1414 = vmul.f32 %v1413, 0.6931472
        %v1415 = vlog2.pop %v1387
        %v1416 = vmul.f32 %v1415, 0.6931472
        %v1417 = vlog2.pop %v1388
        %v1418 = vmul.f32 %v1417, 0.6931472
        %v1419 = vlog2.pop %v1389
        %v1420 = vmul.f32 %v1419, 0.6931472
        %v1421 = vlog2.pop %v1390
        %v1422 = vmul.f32 %v1421, 0.6931472
        %v1423 = vmul.f32 %v1392, 0.4342945
        %v1424 = vmul.f32 %v1394, 0.4342945
        %v1425 = vmul.f32 %v1396, 0.4342945
        %v1426 = vmul.f32 %v1398, 0.4342945
        %v1427 = vmul.f32 %v1400, 0.4342945
        %v1428 = vmul.f32 %v1402, 0.4342945
        %v1429 = vmul.f32 %v1404, 0.4342945
        %v1430 = vmul.f32 %v1406, 0.4342945
        %v1431 = vmul.f32 %v1408, 0.4342945
        %v1432 = vmul.f32 %v1410, 0.4342945
        %v1433 = vmul.f32 %v1412, 0.4342945
        %v1434 = vmul.f32 %v1414, 0.4342945
        %v1435 = vmul.f32 %v1416, 0.4342945
        %v1436 = vmul.f32 %v1418, 0.4342945
        %v1437 = vmul.f32 %v1420, 0.4342945
        %v1438 = vmul.f32 %v1422, 0.4342945
        %v1439 = vmul.f32 %v1423, 10.0
        %v1440 = vmul.f32 %v1424, 10.0
        %v1441 = vmul.f32 %v1425, 10.0
        %v1442 = vmul.f32 %v1426, 10.0
        %v1443 = vmul.f32 %v1427, 10.0
        %v1444 = vmul.f32 %v1428, 10.0
        %v1445 = vmul.f32 %v1429, 10.0
        %v1446 = vmul.f32 %v1430, 10.0
        %v1447 = vmul.f32 %v1431, 10.0
        %v1448 = vmul.f32 %v1432, 10.0
        %v1449 = vmul.f32 %v1433, 10.0
        %v1450 = vmul.f32 %v1434, 10.0
        %v1451 = vmul.f32 %v1435, 10.0
        %v1452 = vmul.f32 %v1436, 10.0
        %v1453 = vmul.f32 %v1437, 10.0
        %v1454 = vmul.f32 %v1438, 10.0
        %v1455 = vlaneseq
        %v1456 = vshrl.u32 %v1455, 7
        %v1457 = vadd.s32 %v1456, 8
        %v1458 = vadd.s32 %v1456, 16
        %v1459 = vadd.s32 %v1456, 24
        %v1460 = vadd.s32 %v1456, 32
        %v1461 = vadd.s32 %v1456, 40
        %v1462 = vadd.s32 %v1456, 48
        %v1463 = vadd.s32 %v1456, 56
        %v1464 = vadd.s32 %v1456, 64
        %v1465 = vadd.s32 %v1456, 72
        %v1466 = vadd.s32 %v1456, 80
        %v1467 = vadd.s32 %v1456, 88
        %v1468 = vadd.s32 %v1456, 96
        %v1469 = vadd.s32 %v1456, 104
        %v1470 = vadd.s32 %v1456, 112
        %v1471 = vadd.s32 %v1456, 120
        %vm1472 = vcmp.lt.s32.totalorder %v1456, 17
        %vm1473 = vcmp.lt.s32.totalorder %v1457, 17
        %vm1474 = vcmp.lt.s32.totalorder %v1458, 17
        %vm1475 = vcmp.lt.s32.totalorder %v1459, 17
        %vm1476 = vcmp.lt.s32.totalorder %v1460, 17
        %vm1477 = vcmp.lt.s32.totalorder %v1461, 17
        %vm1478 = vcmp.lt.s32.totalorder %v1462, 17
        %vm1479 = vcmp.lt.s32.totalorder %v1463, 17
        %vm1480 = vcmp.lt.s32.totalorder %v1464, 17
        %vm1481 = vcmp.lt.s32.totalorder %v1465, 17
        %vm1482 = vcmp.lt.s32.totalorder %v1466, 17
        %vm1483 = vcmp.lt.s32.totalorder %v1467, 17
        %vm1484 = vcmp.lt.s32.totalorder %v1468, 17
        %vm1485 = vcmp.lt.s32.totalorder %v1469, 17
        %vm1486 = vcmp.lt.s32.totalorder %v1470, 17
        %vm1487 = vcmp.lt.s32.totalorder %v1471, 17
        %v1488 = vsel %vm1472, %v1439, -inf
        %v1489 = vsel %vm1473, %v1440, -inf
        %v1490 = vsel %vm1474, %v1441, -inf
        %v1491 = vsel %vm1475, %v1442, -inf
        %v1492 = vsel %vm1476, %v1443, -inf
        %v1493 = vsel %vm1477, %v1444, -inf
        %v1494 = vsel %vm1478, %v1445, -inf
        %v1495 = vsel %vm1479, %v1446, -inf
        %v1496 = vsel %vm1480, %v1447, -inf
        %v1497 = vsel %vm1481, %v1448, -inf
        %v1498 = vsel %vm1482, %v1449, -inf
        %v1499 = vsel %vm1483, %v1450, -inf
        %v1500 = vsel %vm1484, %v1451, -inf
        %v1501 = vsel %vm1485, %v1452, -inf
        %v1502 = vsel %vm1486, %v1453, -inf
        %v1503 = vsel %vm1487, %v1454, -inf
        %vm1504 = vcmask 130048
        %v1505 = vsel %vm1504, %v1488, -inf
        %v1506 = vsel %vm1504, %v1489, -inf
        %v1507 = vsel %vm1504, %v1490, -inf
        %v1508 = vsel %vm1504, %v1491, -inf
        %v1509 = vsel %vm1504, %v1492, -inf
        %v1510 = vmax.f32 %v1505, %v1509
        %v1511 = vsel %vm1504, %v1493, -inf
        %v1512 = vmax.f32 %v1506, %v1511
        %v1513 = vsel %vm1504, %v1494, -inf
        %v1514 = vmax.f32 %v1507, %v1513
        %v1515 = vsel %vm1504, %v1495, -inf
        %v1516 = vmax.f32 %v1508, %v1515
        %v1517 = vsel %vm1504, %v1496, -inf
        %v1518 = vmax.f32 %v1510, %v1517
        %v1519 = vsel %vm1504, %v1497, -inf
        %v1520 = vmax.f32 %v1512, %v1519
        %v1521 = vsel %vm1504, %v1498, -inf
        %v1522 = vmax.f32 %v1514, %v1521
        %v1523 = vsel %vm1504, %v1499, -inf
        %v1524 = vmax.f32 %v1516, %v1523
        %v1525 = vsel %vm1504, %v1500, -inf
        %v1526 = vmax.f32 %v1518, %v1525
        %v1527 = vsel %vm1504, %v1501, -inf
        %v1528 = vmax.f32 %v1520, %v1527
        %v1529 = vsel %vm1504, %v1502, -inf
        %v1530 = vmax.f32 %v1522, %v1529
        %v1531 = vsel %vm1504, %v1503, -inf
        %v1532 = vmax.f32 %v1524, %v1531
        %v1533 = vmax.f32 %v1526, %v1528
        %v1534 = vmax.f32 %v1530, %v1532
        %v1535 = vmax.f32 %v1533, %v1534
        %1536 = vmax.xlane.f32.xlu0 %v1535
        %v1537 = vpop.xlane.xlu0 %1536
        %v1538 = vrot.slane %v1537, 4
        %v1539 = vmax.f32 %v1537, %v1538
        %v1540 = vrot.slane %v1539, 2
        %v1541 = vmax.f32 %v1539, %v1540
        %v1542 = vrot.slane %v1541, 1
        %v1543 = vmax.f32 %v1541, %v1542
        %s1544 = vtos %v1543
        %s1545 = ssub.f32 %s1544, 80.0
        %v1546 = vstv %s1545
        %v1547 = vmax.f32 %v1439, %v1546
        %v1548 = vmax.f32 %v1440, %v1546
        %v1549 = vmax.f32 %v1441, %v1546
        %v1550 = vmax.f32 %v1442, %v1546
        %v1551 = vmax.f32 %v1443, %v1546
        %v1552 = vmax.f32 %v1444, %v1546
        %v1553 = vmax.f32 %v1445, %v1546
        %v1554 = vmax.f32 %v1446, %v1546
        %v1555 = vmax.f32 %v1447, %v1546
        %v1556 = vmax.f32 %v1448, %v1546
        %v1557 = vmax.f32 %v1449, %v1546
        %v1558 = vmax.f32 %v1450, %v1546
        %v1559 = vmax.f32 %v1451, %v1546
        %v1560 = vmax.f32 %v1452, %v1546
        %v1561 = vmax.f32 %v1453, %v1546
        %v1562 = vmax.f32 %v1454, %v1546
        %v1563 = vsel %vm1472, %v1547, inf
        %v1564 = vsel %vm1473, %v1548, inf
        %v1565 = vsel %vm1474, %v1549, inf
        %v1566 = vsel %vm1475, %v1550, inf
        %v1567 = vsel %vm1476, %v1551, inf
        %v1568 = vsel %vm1477, %v1552, inf
        %v1569 = vsel %vm1478, %v1553, inf
        %v1570 = vsel %vm1479, %v1554, inf
        %v1571 = vsel %vm1480, %v1555, inf
        %v1572 = vsel %vm1481, %v1556, inf
        %v1573 = vsel %vm1482, %v1557, inf
        %v1574 = vsel %vm1483, %v1558, inf
        %v1575 = vsel %vm1484, %v1559, inf
        %v1576 = vsel %vm1485, %v1560, inf
        %v1577 = vsel %vm1486, %v1561, inf
        %v1578 = vsel %vm1487, %v1562, inf
        %v1579 = vsel %vm1504, %v1563, inf
        %v1580 = vsel %vm1504, %v1564, inf
        %v1581 = vsel %vm1504, %v1565, inf
        %v1582 = vsel %vm1504, %v1566, inf
        %v1583 = vsel %vm1504, %v1567, inf
        %v1584 = vmin.f32 %v1579, %v1583
        %v1585 = vsel %vm1504, %v1568, inf
        %v1586 = vmin.f32 %v1580, %v1585
        %v1587 = vsel %vm1504, %v1569, inf
        %v1588 = vmin.f32 %v1581, %v1587
        %v1589 = vsel %vm1504, %v1570, inf
        %v1590 = vmin.f32 %v1582, %v1589
        %v1591 = vsel %vm1504, %v1571, inf
        %v1592 = vmin.f32 %v1584, %v1591
        %v1593 = vsel %vm1504, %v1572, inf
        %v1594 = vmin.f32 %v1586, %v1593
        %v1595 = vsel %vm1504, %v1573, inf
        %v1596 = vmin.f32 %v1588, %v1595
        %v1597 = vsel %vm1504, %v1574, inf
        %v1598 = vmin.f32 %v1590, %v1597
        %v1599 = vsel %vm1504, %v1575, inf
        %v1600 = vmin.f32 %v1592, %v1599
        %v1601 = vsel %vm1504, %v1576, inf
        %v1602 = vmin.f32 %v1594, %v1601
        %v1603 = vsel %vm1504, %v1577, inf
        %v1604 = vmin.f32 %v1596, %v1603
        %v1605 = vsel %vm1504, %v1578, inf
        %v1606 = vmin.f32 %v1598, %v1605
        %v1607 = vmin.f32 %v1600, %v1602
        %v1608 = vmin.f32 %v1604, %v1606
        %v1609 = vmin.f32 %v1607, %v1608
        %1610 = vmin.xlane.f32.xlu0 %v1609
        %v1611 = vpop.xlane.xlu0 %1610
        %v1612 = vrot.slane %v1611, 4
        %v1613 = vmin.f32 %v1611, %v1612
        %v1614 = vrot.slane %v1613, 2
        %v1615 = vmin.f32 %v1613, %v1614
        %v1616 = vrot.slane %v1615, 1
        %v1617 = vmin.f32 %v1615, %v1616
        %s1618 = vtos %v1617
        %v1619 = vstv %s1544
        %v1620 = vsub.f32 %v1547, %v1619
        %v1621 = vsub.f32 %v1548, %v1619
        %v1622 = vsub.f32 %v1549, %v1619
        %v1623 = vsub.f32 %v1550, %v1619
        %v1624 = vsub.f32 %v1551, %v1619
        %v1625 = vsub.f32 %v1552, %v1619
        %v1626 = vsub.f32 %v1553, %v1619
        %v1627 = vsub.f32 %v1554, %v1619
        %v1628 = vsub.f32 %v1555, %v1619
        %v1629 = vsub.f32 %v1556, %v1619
        %v1630 = vsub.f32 %v1557, %v1619
        %v1631 = vsub.f32 %v1558, %v1619
        %v1632 = vsub.f32 %v1559, %v1619
        %v1633 = vsub.f32 %v1560, %v1619
        %v1634 = vsub.f32 %v1561, %v1619
        %v1635 = vsub.f32 %v1562, %v1619
        %s1636 = ssub.f32 %s1618, %s1544
        %s1637 = sadd.f32 %s1636, 1e-06
        %v1638 = vstv %s1637
        %v1639 = vrcp.pop %v1638
        %v1640 = vmul.f32 %v1620, %v1639
        %v1641 = vmul.f32 %v1621, %v1639
        %v1642 = vmul.f32 %v1622, %v1639
        %v1643 = vmul.f32 %v1623, %v1639
        %v1644 = vmul.f32 %v1624, %v1639
        %v1645 = vmul.f32 %v1625, %v1639
        %v1646 = vmul.f32 %v1626, %v1639
        %v1647 = vmul.f32 %v1627, %v1639
        %v1648 = vmul.f32 %v1628, %v1639
        %v1649 = vmul.f32 %v1629, %v1639
        %v1650 = vmul.f32 %v1630, %v1639
        %v1651 = vmul.f32 %v1631, %v1639
        %v1652 = vmul.f32 %v1632, %v1639
        %v1653 = vmul.f32 %v1633, %v1639
        %v1654 = vmul.f32 %v1634, %v1639
        %v1655 = vmul.f32 %v1635, %v1639
        %1656 = vxpose.xlu0.b32.start [1/16] %v1640, 128
        %1657 = vxpose.xlu0.b32.cont [2/16] %v1641, 128
        %1658 = vxpose.xlu0.b32.cont [3/16] %v1642, 128
        %1659 = vxpose.xlu0.b32.cont [4/16] %v1643, 128
        %1660 = vxpose.xlu0.b32.cont [5/16] %v1644, 128
        %1661 = vxpose.xlu0.b32.cont [6/16] %v1645, 128
        %1662 = vxpose.xlu0.b32.cont [7/16] %v1646, 128
        %1663 = vxpose.xlu0.b32.cont [8/16] %v1647, 128
        %1664 = vxpose.xlu0.b32.cont [9/16] %v1648, 128
        %1665 = vxpose.xlu0.b32.cont [10/16] %v1649, 128
        %1666 = vxpose.xlu0.b32.cont [11/16] %v1650, 128
        %1667 = vxpose.xlu0.b32.cont [12/16] %v1651, 128
        %1668 = vxpose.xlu0.b32.cont [13/16] %v1652, 128
        %1669 = vxpose.xlu0.b32.cont [14/16] %v1653, 128
        %1670 = vxpose.xlu0.b32.cont [15/16] %v1654, 128
        %1671 = vxpose.xlu0.b32.end [16/16] %v1655, 128
        %v1672 = vpop.trf.xlu0
        %v1673 = vpop.trf.xlu0
        %v1674 = vpop.trf.xlu0
        %v1675 = vpop.trf.xlu0
        %v1676 = vpop.trf.xlu0
        %v1677 = vpop.trf.xlu0
        %v1678 = vpop.trf.xlu0
        %v1679 = vpop.trf.xlu0
        %v1680 = vpop.trf.xlu0
        %v1681 = vpop.trf.xlu0
        %v1682 = vpop.trf.xlu0
        %v1683 = vpop.trf.xlu0
        %v1684 = vpop.trf.xlu0
        %v1685 = vpop.trf.xlu0
        %v1686 = vpop.trf.xlu0
        %v1687 = vpop.trf.xlu0
        %1688 = vst [vmem:[%s163] sm:$0xff] %v1672
        %1689 = vst [vmem:[%s163 + $0x8] sm:$0xff] %v1673
        %s1690 = sand.u32 %s93, 1
        %s1691 = scalar_lea.sflag [#allocation3], %s1690
        %s1692 = sand.u32 %s93, 1
        %s1693 = smul.addr %s1692, 16
        %s1694 = scalar_lea.vmem [#allocation2], %s1693
        // Predicated region
        $region33: #{tpu_custom_call.1} parent=31 // pred_check
          %p1695 = pneg %p103
        $region34: #{tpu_custom_call.1} parent=31 // pred_check_branch
          %1697 = sbr.rel (%p1695) target = $region36
        $region35: #{tpu_custom_call.1} parent=31 // pred_region
          %s1699 = ssub.s32 256, 256
          %1700 = vsyncadd %s1691, %s1699
          %s1701 = smul.addr %s17, 2
          %s1702 = smul.addr %s1701, 128
          %s1703 = scalar_lea.hbm %s3, %s1702
          %s1704 = sshll.u32 %s1694, 4
          %s1705 = int_to_ptr.vmem [resolvable:$true] %s1704
          %1710 = dma.vmem_to_hbm [thread:$0]  %s1705, 256, %s1703, %s1691, 128, 128, 8
        $region36: #{tpu_custom_call.1} parent=31 // pred_fallthru
          _
      $region32: #{tpu_custom_call.1} parent=5 // pred_fallthru
        _
      %p1711 = scmp.le.s32.totalorder 2, %s12
      // Predicated region
      $region37: #{tpu_custom_call.1} parent=5 // pred_check
        %p1712 = pneg %p1711
      $region38: #{tpu_custom_call.1} parent=5 // pred_check_branch
        %1714 = sbr.rel (%p1712) target = $region40
      $region39: #{tpu_custom_call.1} parent=5 // pred_region
        %s1715 = ssub.s32 %s12, 2
        // Predicated region
        $region41: #{tpu_custom_call.1} parent=39 // pred_check
          %p1716 = pneg %p109
        $region42: #{tpu_custom_call.1} parent=39 // pred_check_branch
          %1718 = sbr.rel (%p1716) target = $region44
        $region43: #{tpu_custom_call.1} parent=39 // pred_region
          %s1719 = sand.u32 %s94, 1
          %s1720 = scalar_lea.sflag [#allocation3], %s1719
          %s1721 = sand.u32 %s94, 1
          %s1722 = smul.addr %s1721, 16
          %s1723 = scalar_lea.vmem [#allocation2], %s1722
          %1724 = dma.done %s1720, 256
        $region44: #{tpu_custom_call.1} parent=39 // pred_fallthru
          _
      $region40: #{tpu_custom_call.1} parent=5 // pred_fallthru
        _
    $region6: #{tpu_custom_call.1} parent=1 // loop_footer
      %s16 = sadd.s32 1, %s12
    $region7: #{tpu_custom_call.1} parent=1 // loop_footer_branch
      %11 = sbr.rel target = $region3
    $region8: #{tpu_custom_call.1} parent=1 // loop_exit
      _
    %1725 = vsyncpa [#allocation3], 1
    %s1726 = scalar_lea.sflag [#allocation3], 1
    %1727 = vsyncpa %s1726, 1

</llo_original>
